<compile_context>
chip_gen: v5e
topology: v5e:2x2
jax: 0.10.0
libtpu: 0.0.40
codegen_flags: <defaults>
</compile_context>

<pallas_src>
import functools

import jax
import jax.numpy as jnp
import numpy as np
from jax import lax
from jax.experimental import pallas as pl
from jax.experimental.pallas import tpu as pltpu

LN_EPS = 1e-5  # torch.nn.LayerNorm default eps


def _layernorm(x, gamma, beta):
    mu = jnp.mean(x, axis=-1, keepdims=True)
    var = jnp.mean((x - mu) ** 2, axis=-1, keepdims=True)
    return (x - mu) * lax.rsqrt(var + LN_EPS) * gamma + beta


def slot_attention_kernel(
    x_ref,       # (BB*N, D)  f32   flattened batch-block of input tokens
    qrep_ref,    # (N, H)     bf16  tiled, sqrt(scale)-folded q rows (grid-invariant)
    wkvv_ref,    # (D, 3H)    bf16  fused [wk | wv1 | wv2], k/v1 cols sqrt(scale)-folded
    vecs_ref,    # (8, W)     f32   packed small vectors: [b_kvv ; gin ; bin ; pad]
    out_ref,     # (BB*N, H)  f32
    kvv_ref,     # scratch VMEM (BB*N, 3H) bf16
    rhs_ref,     # scratch VMEM (N, 2H)    bf16  == [q_rep | k_b]
    *, eps, block_b, seq, hidden, dim,
):
    BB, N, H, D = block_b, seq, hidden, dim

    vecs = vecs_ref[...]
    b_kvv = vecs[0:1, : 3 * H]
    g_in = vecs[1:2, :D]
    b_in = vecs[2:3, :D]

    # --- fused k/v1/v2 projection over the whole (BB*N, D) slab: bf16 MXU, f32 acc --
    xn = _layernorm(x_ref[...], g_in, b_in)
    kvv = jnp.dot(xn.astype(jnp.bfloat16), wkvv_ref[...],
                  preferred_element_type=jnp.float32) + b_kvv
    kvv_ref[...] = kvv.astype(jnp.bfloat16)

    # Grid-invariant half of the fused attention RHS, written once per grid step.
    rhs_ref[:, 0:H] = qrep_ref[...]

    dn_t = (((1,), (1,)), ((), ()))  # contract last dims: A @ B^T, no materialized transpose
    # TODO(synk): if the bundle dump shows this A@B^T lowering inserting per-call vxpose
    # on the RHS critical path, pass q_rep pre-transposed and build rhs as (2H, N) instead.

    def body(b, carry):
        rows = pl.ds(pl.multiple_of(b * N, N), N)

        # Fused attention map: one K=2H contraction == scale*(q·k^T)^T + scale*(k·v1^T)^T
        rhs_ref[:, H:2 * H] = kvv_ref[rows, 0:H]                       # k_b
        attn_t = lax.dot_general(kvv_ref[rows, 0:2 * H],               # [k_b | v1_b]
                                 rhs_ref[...], dn_t,
                                 preferred_element_type=jnp.float32)   # (N, N), attn^T

        # torch: attn.softmax(dim=1) == softmax over the last axis of attn_t (f32).
        attn_t = jnp.exp(attn_t - jnp.max(attn_t, axis=-1, keepdims=True))
        attn_t = attn_t * pl.reciprocal(jnp.sum(attn_t, axis=-1, keepdims=True),
                                        approx=True)
        attn_t = attn_t + eps
        # torch: attn / attn.sum(dim=-1) == column-normalize attn_t (exact divide).
        attn_t = attn_t / jnp.sum(attn_t, axis=0, keepdims=True)

        # torch: einsum('bij,bid->bjd', attn, v2) == attn_t @ v2   (bf16 MXU, f32 acc)
        out_ref[rows, :] = jnp.dot(attn_t.astype(jnp.bfloat16),
                                   kvv_ref[rows, 2 * H:3 * H],
                                   preferred_element_type=jnp.float32
                                   ).astype(out_ref.dtype)
        return carry

    lax.fori_loop(0, BB, body, 0)


def _pick_block_b(batch, cap=8, min_grid=4):
    """Largest divisor BB of `batch` (<= cap) keeping the grid length >= min_grid, so
    each v7x TensorCore still gets >= 2 pipelined steps under ("parallel",). Falls back
    to >= 2, then >= 1. On single-TC v5e/v6e a larger BB (shorter grid) amortizes the
    ~0.35 us per-step overhead better -- pass block_b explicitly there and sweep."""
    for target in (min_grid, 2, 1):
        best = 0
        for bb in range(1, min(batch, cap) + 1):
            if batch % bb == 0 and batch // bb >= target:
                best = bb
        if best:
            return best
    return 1


def slot_attention_forward(x, params, *, num_slots, dim, hidden_dim, eps=1e-8,
                           repeat=16, block_b=None):
    B, N, D = x.shape
    assert D == dim
    assert N == repeat * num_slots, "forward() hardcodes repeat([1,16,1]); needs N == 16*num_slots"
    H = hidden_dim
    scale = dim ** (-0.5)
    sqrt_scale = jnp.float32(scale) ** 0.5

    BB = block_b if block_b is not None else _pick_block_b(B)
    assert B % BB == 0

    # --- hoisted, grid-invariant slots path: q_rep = tile(LN(slots) @ wq + bq, 16) ---
    sn = _layernorm(params["slots"].astype(jnp.float32), params["gsl"], params["bsl"])
    q = sn @ params["wq"] + params["bq"]
    q_rep = (jnp.tile(q, (repeat, 1)) * sqrt_scale).astype(jnp.bfloat16)        # (N, H)

    # --- fused projection weights; sqrt(scale) folded into the k / v1 columns --------
    wkvv = jnp.concatenate(
        [params["wk"] * sqrt_scale, params["wv1"] * sqrt_scale, params["wv2"]],
        axis=-1).astype(jnp.bfloat16)                                           # (D, 3H)
    b_kvv = jnp.concatenate(
        [params["bk"] * sqrt_scale, params["bv1"] * sqrt_scale, params["bv2"]],
        axis=-1).astype(jnp.float32)                                            # (1, 3H)

    # --- pack the remaining small vectors into a single aligned (8, W) f32 tile ------
    W = max(3 * H, D)

    def _row(v):
        v = v.astype(jnp.float32)
        return jnp.pad(v, ((0, 0), (0, W - v.shape[-1])))

    vecs = jnp.concatenate(
        [_row(b_kvv), _row(params["gin"]), _row(params["bin"]),
         jnp.zeros((5, W), jnp.float32)],
        axis=0,
    )  # (8, W)

    kernel = functools.partial(
        slot_attention_kernel,
        eps=eps, block_b=BB, seq=N, hidden=H, dim=D,
    )

    x_flat = x.reshape(B * N, D)   # wrapper-side flatten: no in-kernel reshapes

    out_flat = pl.pallas_call(
        kernel,
        out_shape=jax.ShapeDtypeStruct((B * N, H), jnp.float32),
        grid_spec=pltpu.PrefetchScalarGridSpec(
            num_scalar_prefetch=0,
            grid=(B // BB,),
            in_specs=[
                pl.BlockSpec((BB * N, D), lambda g: (g, 0)),       # BB batches of tokens
                pl.BlockSpec((N, H), lambda g: (0, 0)),            # q_rep (grid invariant)
                pl.BlockSpec((D, 3 * H), lambda g: (0, 0)),        # fused [wk|wv1|wv2]
                pl.BlockSpec((8, W), lambda g: (0, 0)),            # packed biases / LN params
            ],
            out_specs=pl.BlockSpec((BB * N, H), lambda g: (g, 0)),
            scratch_shapes=[
                pltpu.VMEM((BB * N, 3 * H), jnp.bfloat16),         # kvv slab
                pltpu.VMEM((N, 2 * H), jnp.bfloat16),              # [q_rep | k_b] RHS
            ],
        ),
        compiler_params=pltpu.CompilerParams(dimension_semantics=("parallel",)),
    )(x_flat, q_rep, wkvv, vecs)

    return out_flat.reshape(B, N, H)


def reference_forward(x, params, *, dim, eps=1e-8, repeat=16):
    """Pure-JAX f32 reference mirroring the PyTorch forward exactly."""
    scale = dim ** (-0.5)
    xn = _layernorm(x, params["gin"], params["bin"])
    k = xn @ params["wk"] + params["bk"]
    v1 = xn @ params["wv1"] + params["bv1"]
    v2 = xn @ params["wv2"] + params["bv2"]
    slots = jnp.broadcast_to(params["slots"][None], (x.shape[0],) + params["slots"].shape)
    sn = _layernorm(slots, params["gsl"], params["bsl"])
    q = sn @ params["wq"] + params["bq"]
    dots_qk = jnp.einsum("bid,bjd->bij", q, k) * scale
    dots_kv1 = jnp.einsum("bid,bjd->bij", k, v1) * scale
    dots_qk = jnp.tile(dots_qk, (1, repeat, 1))
    attn = dots_qk + dots_kv1
    attn = jax.nn.softmax(attn, axis=1) + eps
    attn = attn / jnp.sum(attn, axis=-1, keepdims=True)
    return jnp.einsum("bij,bid->bjd", attn, v2)


def init_params(key, *, num_slots, dim, hidden_dim):
    """Deterministic init matching reset_params(): Linear W ~ N(0, 0.001), b = 0,
    LayerNorm gamma = 1, beta = 0, slots ~ N(0, 1)."""
    ks = jax.random.split(key, 5)
    H, D = hidden_dim, dim
    return {
        "slots": jax.random.normal(ks[0], (num_slots, H), jnp.float32),
        "wq": 0.001 * jax.random.normal(ks[1], (H, H), jnp.float32),
        "bq": jnp.zeros((1, H), jnp.float32),
        "wk": 0.001 * jax.random.normal(ks[2], (D, H), jnp.float32),
        "bk": jnp.zeros((1, H), jnp.float32),
        "wv1": 0.001 * jax.random.normal(ks[3], (D, H), jnp.float32),
        "bv1": jnp.zeros((1, H), jnp.float32),
        "wv2": 0.001 * jax.random.normal(ks[4], (D, H), jnp.float32),
        "bv2": jnp.zeros((1, H), jnp.float32),
        "gin": jnp.ones((1, D), jnp.float32),
        "bin": jnp.zeros((1, D), jnp.float32),
        "gsl": jnp.ones((1, H), jnp.float32),
        "bsl": jnp.zeros((1, H), jnp.float32),
    }


if __name__ == "__main__":
    B = 8                        # BB=2 per grid step -> grid=(4,)  (>= 2 steps/TC on v7x)
    NUM_SLOTS = 8
    REPEAT = 16                  # hardcoded in the PyTorch forward
    N = NUM_SLOTS * REPEAT       # 128 tokens (required by the +dots_kv1 add)
    DIM = 32                     # input feature dim
    HIDDEN = 128                 # hidden_dim (kept small; default 2048 in the module)

    key = jax.random.PRNGKey(0)
    kx, kp = jax.random.split(key)
    x = jax.random.normal(kx, (B, N, DIM), jnp.float32)
    params = init_params(kp, num_slots=NUM_SLOTS, dim=DIM, hidden_dim=HIDDEN)

    out = slot_attention_forward(
        x, params, num_slots=NUM_SLOTS, dim=DIM, hidden_dim=HIDDEN, eps=1e-8, repeat=REPEAT
    )
    out = jax.block_until_ready(out)

    ref = jax.block_until_ready(reference_forward(x, params, dim=DIM, eps=1e-8, repeat=REPEAT))
    # Tolerance re-derived for bf16 MXU operands (f32 accumulation, f32 softmax) plus the
    # approximate softmax-denominator reciprocal; estimated abs error is ~1e-5 against an
    # output scale of ~5e-4, so rtol=2e-2 / atol=1e-4 leaves ~10x margin.
    np.testing.assert_allclose(np.asarray(out), np.asarray(ref), rtol=2e-2, atol=1e-4)

    print("KERNEL_OK")
</pallas_src>

<mosaic_0001>
module attributes {stable_mosaic.version = 11 : i64} {
  func.func @slot_attention_kernel(%arg0: i32, %arg1: memref<256x32xf32, #tpu.memory_space<vmem>>, %arg2: memref<128x128xbf16, #tpu.memory_space<vmem>>, %arg3: memref<32x384xbf16, #tpu.memory_space<vmem>>, %arg4: memref<8x384xf32, #tpu.memory_space<vmem>>, %arg5: memref<256x128xf32, #tpu.memory_space<vmem>>, %arg6: memref<256x384xbf16, #tpu.memory_space<vmem>>, %arg7: memref<128x256xbf16, #tpu.memory_space<vmem>>) attributes {dimension_semantics = [#tpu.dimension_semantics<parallel>], iteration_bounds = array<i64: 4>, scalar_prefetch = 0 : i64, scratch_operands = 2 : i64, tpu.core_type = #tpu.core_type<tc>, window_params = [{transform_indices = @transform_0, window_bounds = array<i64: 256, 32>}, {pipeline_mode = #tpu.pipeline_mode<synchronous>, transform_indices = @transform_1, window_bounds = array<i64: 128, 128>}, {pipeline_mode = #tpu.pipeline_mode<synchronous>, transform_indices = @transform_2, window_bounds = array<i64: 32, 384>}, {pipeline_mode = #tpu.pipeline_mode<synchronous>, transform_indices = @transform_3, window_bounds = array<i64: 8, 384>}, {transform_indices = @transform_4, window_bounds = array<i64: 256, 128>}]} {
    %c0 = arith.constant 0 : index
    %c0_0 = arith.constant 0 : index
    %0 = vector.load %arg4[%c0, %c0_0] : memref<8x384xf32, #tpu.memory_space<vmem>>, vector<8x384xf32>
    %1 = vector.extract_strided_slice %0 {offsets = [0, 0], sizes = [1, 384], strides = [1, 1]} : vector<8x384xf32> to vector<1x384xf32>
    %2 = vector.extract_strided_slice %0 {offsets = [1, 0], sizes = [1, 32], strides = [1, 1]} : vector<8x384xf32> to vector<1x32xf32>
    %3 = vector.extract_strided_slice %0 {offsets = [2, 0], sizes = [1, 32], strides = [1, 1]} : vector<8x384xf32> to vector<1x32xf32>
    %c0_1 = arith.constant 0 : index
    %c0_2 = arith.constant 0 : index
    %4 = vector.load %arg1[%c0_1, %c0_2] : memref<256x32xf32, #tpu.memory_space<vmem>>, vector<256x32xf32>
    %cst = arith.constant dense<0.000000e+00> : vector<256xf32>
    %5 = vector.multi_reduction <add>, %4, %cst [1] : vector<256x32xf32> to vector<256xf32>
    %6 = vector.shape_cast %5 : vector<256xf32> to vector<256x1xf32>
    %cst_3 = arith.constant 3.200000e+01 : f32
    %7 = vector.broadcast %cst_3 : f32 to vector<256x1xf32>
    %8 = arith.divf %6, %7 : vector<256x1xf32>
    %9 = vector.broadcast %8 : vector<256x1xf32> to vector<256x32xf32>
    %10 = arith.subf %4, %9 : vector<256x32xf32>
    %11 = arith.mulf %10, %10 : vector<256x32xf32>
    %cst_4 = arith.constant dense<0.000000e+00> : vector<256xf32>
    %12 = vector.multi_reduction <add>, %11, %cst_4 [1] : vector<256x32xf32> to vector<256xf32>
    %13 = vector.shape_cast %12 : vector<256xf32> to vector<256x1xf32>
    %cst_5 = arith.constant 3.200000e+01 : f32
    %14 = vector.broadcast %cst_5 : f32 to vector<256x1xf32>
    %15 = arith.divf %13, %14 : vector<256x1xf32>
    %16 = vector.broadcast %8 : vector<256x1xf32> to vector<256x32xf32>
    %17 = arith.subf %4, %16 : vector<256x32xf32>
    %cst_6 = arith.constant 9.99999974E-6 : f32
    %18 = vector.broadcast %cst_6 : f32 to vector<256x1xf32>
    %19 = arith.addf %15, %18 : vector<256x1xf32>
    %20 = math.rsqrt %19 : vector<256x1xf32>
    %21 = vector.broadcast %20 : vector<256x1xf32> to vector<256x32xf32>
    %22 = arith.mulf %17, %21 : vector<256x32xf32>
    %23 = vector.broadcast %2 : vector<1x32xf32> to vector<256x32xf32>
    %24 = arith.mulf %22, %23 : vector<256x32xf32>
    %25 = vector.broadcast %3 : vector<1x32xf32> to vector<256x32xf32>
    %26 = arith.addf %24, %25 : vector<256x32xf32>
    %27 = arith.truncf %26 : vector<256x32xf32> to vector<256x32xbf16>
    %c0_7 = arith.constant 0 : index
    %c0_8 = arith.constant 0 : index
    %28 = vector.load %arg3[%c0_7, %c0_8] : memref<32x384xbf16, #tpu.memory_space<vmem>>, vector<32x384xbf16>
    %cst_9 = arith.constant dense<0.000000e+00> : vector<256x384xf32>
    %29 = tpu.matmul %27, %28, %cst_9 {dimension_numbers = #tpu.dot_dimension_numbers<[1], [0], [0], [1], [0, 0, 1, 1], [], []>} : vector<256x32xbf16>, vector<32x384xbf16>, vector<256x384xf32> -> vector<256x384xf32>
    %30 = vector.broadcast %1 : vector<1x384xf32> to vector<256x384xf32>
    %31 = arith.addf %29, %30 : vector<256x384xf32>
    %32 = arith.truncf %31 : vector<256x384xf32> to vector<256x384xbf16>
    %c0_10 = arith.constant 0 : index
    %c0_11 = arith.constant 0 : index
    %33 = vector.load %arg6[%c0_10, %c0_11] : memref<256x384xbf16, #tpu.memory_space<vmem>>, vector<256x384xbf16>
    tpu.vector_store %arg6[%c0_10, %c0_11], %32 {strides = array<i32>} : memref<256x384xbf16, #tpu.memory_space<vmem>>, vector<256x384xbf16>,
    %c0_12 = arith.constant 0 : index
    %c0_13 = arith.constant 0 : index
    %34 = vector.load %arg2[%c0_12, %c0_13] : memref<128x128xbf16, #tpu.memory_space<vmem>>, vector<128x128xbf16>
    %c0_14 = arith.constant 0 : index
    %c0_15 = arith.constant 0 : index
    %35 = vector.load %arg7[%c0_14, %c0_15] : memref<128x256xbf16, #tpu.memory_space<vmem>>, vector<128x128xbf16>
    tpu.vector_store %arg7[%c0_14, %c0_15], %34 {strides = array<i32>} : memref<128x256xbf16, #tpu.memory_space<vmem>>, vector<128x128xbf16>,
    %c0_i32 = arith.constant 0 : i32
    %c2_i32 = arith.constant 2 : i32
    %36 = arith.addi %c0_i32, %c2_i32 : i32
    %c1_i32 = arith.constant 1 : i32
    scf.for %arg8 = %c0_i32 to %36 step %c1_i32  : i32 {
      %c128_i32 = arith.constant 128 : i32
      %37 = arith.muli %arg8, %c128_i32 : i32
      %38 = tpu.assume_multiple %37, 128 : i32
      %39 = arith.index_cast %38 : i32 to index
      %c0_17 = arith.constant 0 : index
      %40 = vector.load %arg6[%39, %c0_17] : memref<256x384xbf16, #tpu.memory_space<vmem>>, vector<128x128xbf16>
      %c0_18 = arith.constant 0 : index
      %c128 = arith.constant 128 : index
      %41 = vector.load %arg7[%c0_18, %c128] : memref<128x256xbf16, #tpu.memory_space<vmem>>, vector<128x128xbf16>
      tpu.vector_store %arg7[%c0_18, %c128], %40 {strides = array<i32>} : memref<128x256xbf16, #tpu.memory_space<vmem>>, vector<128x128xbf16>,
      %42 = arith.index_cast %38 : i32 to index
      %c0_19 = arith.constant 0 : index
      %43 = vector.load %arg6[%42, %c0_19] : memref<256x384xbf16, #tpu.memory_space<vmem>>, vector<128x256xbf16>
      %c0_20 = arith.constant 0 : index
      %c0_21 = arith.constant 0 : index
      %44 = vector.load %arg7[%c0_20, %c0_21] : memref<128x256xbf16, #tpu.memory_space<vmem>>, vector<128x256xbf16>
      %cst_22 = arith.constant dense<0.000000e+00> : vector<128x128xf32>
      %45 = tpu.matmul %43, %44, %cst_22 {dimension_numbers = #tpu.dot_dimension_numbers<[1], [1], [0], [0], [0, 0, 1, 0], [], []>} : vector<128x256xbf16>, vector<128x256xbf16>, vector<128x128xf32> -> vector<128x128xf32>
      %cst_23 = arith.constant dense<0xFF800000> : vector<128xf32>
      %46 = vector.multi_reduction <maximumf>, %45, %cst_23 [1] : vector<128x128xf32> to vector<128xf32>
      %47 = vector.shape_cast %46 : vector<128xf32> to vector<128x1xf32>
      %48 = vector.broadcast %47 : vector<128x1xf32> to vector<128x128xf32>
      %49 = arith.subf %45, %48 : vector<128x128xf32>
      %50 = math.exp %49 : vector<128x128xf32>
      %cst_24 = arith.constant dense<0.000000e+00> : vector<128xf32>
      %51 = vector.multi_reduction <add>, %50, %cst_24 [1] : vector<128x128xf32> to vector<128xf32>
      %52 = vector.shape_cast %51 : vector<128xf32> to vector<128x1xf32>
      %53 = tpu.reciprocal %52 {approx = true} : vector<128x1xf32> -> vector<128x1xf32>
      %54 = vector.broadcast %53 : vector<128x1xf32> to vector<128x128xf32>
      %55 = arith.mulf %50, %54 : vector<128x128xf32>
      %cst_25 = arith.constant 9.99999993E-9 : f32
      %56 = vector.broadcast %cst_25 : f32 to vector<128x128xf32>
      %57 = arith.addf %55, %56 : vector<128x128xf32>
      %cst_26 = arith.constant dense<0.000000e+00> : vector<128xf32>
      %58 = vector.multi_reduction <add>, %57, %cst_26 [0] : vector<128x128xf32> to vector<128xf32>
      %59 = vector.shape_cast %58 : vector<128xf32> to vector<1x128xf32>
      %60 = vector.broadcast %59 : vector<1x128xf32> to vector<128x128xf32>
      %61 = arith.divf %57, %60 : vector<128x128xf32>
      %62 = arith.truncf %61 : vector<128x128xf32> to vector<128x128xbf16>
      %63 = arith.index_cast %38 : i32 to index
      %c256 = arith.constant 256 : index
      %64 = vector.load %arg6[%63, %c256] : memref<256x384xbf16, #tpu.memory_space<vmem>>, vector<128x128xbf16>
      %cst_27 = arith.constant dense<0.000000e+00> : vector<128x128xf32>
      %65 = tpu.matmul %62, %64, %cst_27 {dimension_numbers = #tpu.dot_dimension_numbers<[1], [0], [0], [1], [0, 0, 1, 1], [], []>} : vector<128x128xbf16>, vector<128x128xbf16>, vector<128x128xf32> -> vector<128x128xf32>
      %66 = arith.index_cast %38 : i32 to index
      %c0_28 = arith.constant 0 : index
      %67 = vector.load %arg5[%66, %c0_28] : memref<256x128xf32, #tpu.memory_space<vmem>>, vector<128x128xf32>
      tpu.vector_store %arg5[%66, %c0_28], %65 {strides = array<i32>} : memref<256x128xf32, #tpu.memory_space<vmem>>, vector<128x128xf32>,
    }
    %c2_i32_16 = arith.constant 2 : i32
    return
  }
  func.func @transform_0(%arg0: i32) -> (i32, i32) {
    %c0_i32 = arith.constant 0 : i32
    %c0_i32_0 = arith.constant 0 : i32
    return %arg0, %c0_i32 : i32, i32
  }
  func.func @transform_1(%arg0: i32) -> (i32, i32) {
    %c0_i32 = arith.constant 0 : i32
    %c0_i32_0 = arith.constant 0 : i32
    %c0_i32_1 = arith.constant 0 : i32
    return %c0_i32, %c0_i32_0 : i32, i32
  }
  func.func @transform_2(%arg0: i32) -> (i32, i32) {
    %c0_i32 = arith.constant 0 : i32
    %c0_i32_0 = arith.constant 0 : i32
    %c0_i32_1 = arith.constant 0 : i32
    return %c0_i32, %c0_i32_0 : i32, i32
  }
  func.func @transform_3(%arg0: i32) -> (i32, i32) {
    %c0_i32 = arith.constant 0 : i32
    %c0_i32_0 = arith.constant 0 : i32
    %c0_i32_1 = arith.constant 0 : i32
    return %c0_i32, %c0_i32_0 : i32, i32
  }
  func.func @transform_4(%arg0: i32) -> (i32, i32) {
    %c0_i32 = arith.constant 0 : i32
    %c0_i32_0 = arith.constant 0 : i32
    return %arg0, %c0_i32 : i32, i32
  }
}

</mosaic_0001>

<llo_original>
// kernel: tpu_custom_call.1
$region0: #{tpu_custom_call.1}
  #allocation0 [shape = 'u32[]', space=smem, size = 0x4, offset = 0x4, fixed_abs, tag = 'smem constant byte address 0x4 - core index']
  #allocation1 [shape = 'u32[72,128]{1,0:T(1,128)}', space=vmem, size = 0x9000, scoped, tag = 'internal scratch']
  #allocation2 [shape = 'bf16[256,384]{1,0:T(8,128)(2,1)}', space=vmem, size = 0x30000, scoped, tag = 'scratch operand']
  #allocation3 [shape = 'bf16[128,256]{1,0:T(8,128)(2,1)}', space=vmem, size = 0x10000, scoped, tag = 'scratch operand']
  %s0 = inlined_call_operand.vmem [shape: f32[1024,32], index: 0, kind: input, shape index: {}]
  %s1 = inlined_call_operand.vmem [shape: bf16[128,128], index: 1, kind: input, shape index: {}]
  %s2 = inlined_call_operand.vmem [shape: bf16[32,384], index: 2, kind: input, shape index: {}]
  %s3 = inlined_call_operand.vmem [shape: f32[8,384], index: 3, kind: input, shape index: {}]
  %s4 = inlined_call_operand.hbm [shape: f32[1024,128], index: 4, kind: output, shape index: {}]
  %s5 = sld [smem:[#allocation0]]
  $region56: #{tpu_custom_call.1} parent=0
    _
  %s7 = ssub.s32 1, %s5
  %s8 = scalar_select 0, %s7, %s5
  $region1: #{tpu_custom_call.1} parent=0
    #allocation4 [shape = 'u8[262144]{0}', space=vmem, size = 0x40000, scoped, tag = 'output window, operand 0']
    #allocation5 [shape = 's32[2]{0}', space=sflag, size = 0x8, scoped, tag = 'scoped memory for tpu_custom_call.1']
    %9 = vsyncpa [#allocation5], 0
    %s10 = scalar_lea.sflag [#allocation5], 1
    %11 = vsyncpa %s10, 0
    loop: start=0, step=1, limit=6
    $region2: #{tpu_custom_call.1} parent=1 // loop_pre_header
      _
    $region3: #{tpu_custom_call.1} parent=1 // loop_header
      %s13 = sphi 0, %s17
      %p14 = scmp.ge.s32.totalorder %s13, 6
      %s23 = sphi 0, %s25
      %s26 = sphi 0, %s23
      %s27 = sphi 0, %s26
      %s43 = sphi 0, %s27
      %s47 = sphi 0, %s47
      %s49 = sphi 0, %s47
      %s50 = sphi 0, %s49
      %s64 = sphi 0, %s50
      %s68 = sphi 0, %s68
      %s70 = sphi 0, %s68
      %s71 = sphi 0, %s70
      %s85 = sphi 0, %s71
      %s89 = sphi 0, %s89
      %s91 = sphi 0, %s89
      %s92 = sphi 0, %s91
      %s106 = sphi 0, %s92
      %s112 = sphi 0, %s114
      %s115 = sphi 0, %s112
      %s116 = sphi 0, %s115
      %s132 = sphi 0, %s116
    $region4: #{tpu_custom_call.1} parent=1 // loop_header_branch
      %16 = sbr.rel (%p14) target = $region8
    $region5: #{tpu_custom_call.1} parent=1 // loop_body
      %s18 = ssub.s32 %s13, 1
      %s19 = ssub.s32 %s13, 2
      %s20 = sadd.s32 %s13, 1
      %s21 = ssub.s32 %s13, %s20
      %p22 = scmp.eq.s32.totalorder %s21, 0
      %s24 = sadd.s32 %s23, 1
      %s25 = scalar_select %p22, %s23, %s24
      %p28 = pneg %p22
      %p29 = scmp.eq.s32.totalorder %s13, 3
      %p30 = por %p28, %p29
      %p31 = scmp.ne.s32.totalorder %s23, %s26
      %p32 = scmp.eq.s32.totalorder %s13, 0
      %p33 = por %p31, %p32
      %p34 = scmp.ne.s32.totalorder %s23, %s26
      %p35 = scmp.eq.s32.totalorder %s18, 3
      %p36 = por %p34, %p35
      %p37 = scmp.ne.s32.totalorder %s26, %s27
      %p38 = scmp.eq.s32.totalorder %s18, 0
      %p39 = por %p37, %p38
      %p40 = scmp.ne.s32.totalorder %s26, %s27
      %p41 = scmp.eq.s32.totalorder %s19, 3
      %p42 = por %p40, %p41
      %p44 = scmp.ne.s32.totalorder %s27, %s43
      %p45 = scmp.eq.s32.totalorder %s19, 0
      %p46 = por %p44, %p45
      %s48 = sadd.s32 %s47, 1
      %p51 = scmp.eq.s32.totalorder %s13, 3
      %p52 = scmp.ne.s32.totalorder %s47, %s49
      %p53 = scmp.eq.s32.totalorder %s13, 0
      %p54 = por %p52, %p53
      %p55 = scmp.ne.s32.totalorder %s47, %s49
      %p56 = scmp.eq.s32.totalorder %s18, 3
      %p57 = por %p55, %p56
      %p58 = scmp.ne.s32.totalorder %s49, %s50
      %p59 = scmp.eq.s32.totalorder %s18, 0
      %p60 = por %p58, %p59
      %p61 = scmp.ne.s32.totalorder %s49, %s50
      %p62 = scmp.eq.s32.totalorder %s19, 3
      %p63 = por %p61, %p62
      %p65 = scmp.ne.s32.totalorder %s50, %s64
      %p66 = scmp.eq.s32.totalorder %s19, 0
      %p67 = por %p65, %p66
      %s69 = sadd.s32 %s68, 1
      %p72 = scmp.eq.s32.totalorder %s13, 3
      %p73 = scmp.ne.s32.totalorder %s68, %s70
      %p74 = scmp.eq.s32.totalorder %s13, 0
      %p75 = por %p73, %p74
      %p76 = scmp.ne.s32.totalorder %s68, %s70
      %p77 = scmp.eq.s32.totalorder %s18, 3
      %p78 = por %p76, %p77
      %p79 = scmp.ne.s32.totalorder %s70, %s71
      %p80 = scmp.eq.s32.totalorder %s18, 0
      %p81 = por %p79, %p80
      %p82 = scmp.ne.s32.totalorder %s70, %s71
      %p83 = scmp.eq.s32.totalorder %s19, 3
      %p84 = por %p82, %p83
      %p86 = scmp.ne.s32.totalorder %s71, %s85
      %p87 = scmp.eq.s32.totalorder %s19, 0
      %p88 = por %p86, %p87
      %s90 = sadd.s32 %s89, 1
      %p93 = scmp.eq.s32.totalorder %s13, 3
      %p94 = scmp.ne.s32.totalorder %s89, %s91
      %p95 = scmp.eq.s32.totalorder %s13, 0
      %p96 = por %p94, %p95
      %p97 = scmp.ne.s32.totalorder %s89, %s91
      %p98 = scmp.eq.s32.totalorder %s18, 3
      %p99 = por %p97, %p98
      %p100 = scmp.ne.s32.totalorder %s91, %s92
      %p101 = scmp.eq.s32.totalorder %s18, 0
      %p102 = por %p100, %p101
      %p103 = scmp.ne.s32.totalorder %s91, %s92
      %p104 = scmp.eq.s32.totalorder %s19, 3
      %p105 = por %p103, %p104
      %p107 = scmp.ne.s32.totalorder %s92, %s106
      %p108 = scmp.eq.s32.totalorder %s19, 0
      %p109 = por %p107, %p108
      %s110 = ssub.s32 %s13, %s20
      %p111 = scmp.eq.s32.totalorder %s110, 0
      %s113 = sadd.s32 %s112, 1
      %s114 = scalar_select %p111, %s112, %s113
      %p117 = pneg %p111
      %p118 = scmp.eq.s32.totalorder %s13, 3
      %p119 = por %p117, %p118
      %p120 = scmp.ne.s32.totalorder %s112, %s115
      %p121 = scmp.eq.s32.totalorder %s13, 0
      %p122 = por %p120, %p121
      %p123 = scmp.ne.s32.totalorder %s112, %s115
      %p124 = scmp.eq.s32.totalorder %s18, 3
      %p125 = por %p123, %p124
      %p126 = scmp.ne.s32.totalorder %s115, %s116
      %p127 = scmp.eq.s32.totalorder %s18, 0
      %p128 = por %p126, %p127
      %p129 = scmp.ne.s32.totalorder %s115, %s116
      %p130 = scmp.eq.s32.totalorder %s19, 3
      %p131 = por %p129, %p130
      %p133 = scmp.ne.s32.totalorder %s116, %s132
      %p134 = scmp.eq.s32.totalorder %s19, 0
      %p135 = por %p133, %p134
      %p136 = scmp.le.s32.totalorder 1, %s13
      %p137 = scmp.lt.s32.totalorder %s13, 5
      %p138 = pnand %p136, %p137
      %p139 = pneg %p138
      // Predicated region
      $region9: #{tpu_custom_call.1} parent=5 // pred_check
        _
      $region10: #{tpu_custom_call.1} parent=5 // pred_check_branch
        %141 = sbr.rel (%p138) target = $region12
      $region11: #{tpu_custom_call.1} parent=5 // pred_region
        %s142 = ssub.s32 %s13, 1
        // Predicated region
        $region13: #{tpu_custom_call.1} parent=11 // pred_check
          %p143 = pneg %p60
        $region14: #{tpu_custom_call.1} parent=11 // pred_check_branch
          %145 = sbr.rel (%p143) target = $region16
        $region15: #{tpu_custom_call.1} parent=11 // pred_region
          _
        $region16: #{tpu_custom_call.1} parent=11 // pred_fallthru
          _
        // Predicated region
        $region17: #{tpu_custom_call.1} parent=11 // pred_check
          %p146 = pneg %p81
        $region18: #{tpu_custom_call.1} parent=11 // pred_check_branch
          %148 = sbr.rel (%p146) target = $region20
        $region19: #{tpu_custom_call.1} parent=11 // pred_region
          _
        $region20: #{tpu_custom_call.1} parent=11 // pred_fallthru
          _
        // Predicated region
        $region21: #{tpu_custom_call.1} parent=11 // pred_check
          %p149 = pneg %p102
        $region22: #{tpu_custom_call.1} parent=11 // pred_check_branch
          %151 = sbr.rel (%p149) target = $region24
        $region23: #{tpu_custom_call.1} parent=11 // pred_region
          _
        $region24: #{tpu_custom_call.1} parent=11 // pred_fallthru
          _
      $region12: #{tpu_custom_call.1} parent=5 // pred_fallthru
        _
      %p152 = scmp.lt.s32.totalorder %s13, 4
      // Predicated region
      $region25: #{tpu_custom_call.1} parent=5 // pred_check
        %p153 = pneg %p152
      $region26: #{tpu_custom_call.1} parent=5 // pred_check_branch
        %155 = sbr.rel (%p153) target = $region28
      $region27: #{tpu_custom_call.1} parent=5 // pred_region
        // Predicated region
        $region29: #{tpu_custom_call.1} parent=27 // pred_check
          %p156 = pneg %p33
        $region30: #{tpu_custom_call.1} parent=27 // pred_check_branch
          %158 = sbr.rel (%p156) target = $region32
        $region31: #{tpu_custom_call.1} parent=27 // pred_region
          %s159 = smul.u32 32, %s13
          %p160 = scmp.lt.s32.totalorder %s159, 127
          %s161 = scalar_select %p160, %s159, 127
          %s162 = smul.addr %s161, 8
          %s163 = scalar_lea.vmem %s0, %s162
          %s164 = smul.u32 32, %s13
        $region32: #{tpu_custom_call.1} parent=27 // pred_fallthru
          _
      $region28: #{tpu_custom_call.1} parent=5 // pred_fallthru
        _
      %p165 = scmp.le.s32.totalorder 1, %s13
      %p166 = scmp.lt.s32.totalorder %s13, 5
      %p167 = pnand %p165, %p166
      %p168 = pneg %p167
      // Predicated region
      $region33: #{tpu_custom_call.1} parent=5 // pred_check
        _
      $region34: #{tpu_custom_call.1} parent=5 // pred_check_branch
        %170 = sbr.rel (%p167) target = $region36
      $region35: #{tpu_custom_call.1} parent=5 // pred_region
        %s171 = ssub.s32 %s13, 1
        %s172 = smul.u32 32, %s18
        %p173 = scmp.lt.s32.totalorder %s172, 127
        %s174 = scalar_select %p173, %s172, 127
        %s175 = smul.addr %s174, 8
        %s176 = scalar_lea.vmem %s0, %s175
        %p177 = pneg %p39
        %p178 = pneg %p36
        %p179 = pneg %p60
        %p180 = pneg %p57
        %p181 = pneg %p81
        %p182 = pneg %p78
        %p183 = pneg %p102
        %p184 = pneg %p99
        %p185 = pneg %p128
        %p186 = pneg %p125
        %s187 = sand.u32 %s115, 1
        %s188 = scalar_lea.sflag [#allocation5], %s187
        %s189 = sand.u32 %s115, 1
        %s190 = smul.addr %s189, 256
        %s191 = scalar_lea.vmem [#allocation4], %s190
        %s192 = smul.u32 32, %s18
        %p193 = scmp.lt.s32.totalorder %s192, 127
        %s194 = scalar_select %p193, %s192, 127
        %s195 = smul.addr %s194, 8
        %s196 = scalar_lea.vmem %s0, %s195
        %s197 = smul.u32 32, %s18
        %s198 = smul.u32 32, %s18
        %v200 = vld [vmem:[%s3] sm:$0xff]
        %v201 = vld [vmem:[%s3 + $0x8] sm:$0xff]
        %v202 = vld [vmem:[%s3 + $0x10] sm:$0xff]
        %v203 = vld [vmem:[%s196] sm:$0xff]
        %v204 = vld [vmem:[%s196 + $0x8] sm:$0xff]
        %v205 = vld [vmem:[%s196 + $0x10] sm:$0xff]
        %v206 = vld [vmem:[%s196 + $0x18] sm:$0xff]
        %v207 = vld [vmem:[%s196 + $0x20] sm:$0xff]
        %v208 = vld [vmem:[%s196 + $0x28] sm:$0xff]
        %v209 = vld [vmem:[%s196 + $0x30] sm:$0xff]
        %v210 = vld [vmem:[%s196 + $0x38] sm:$0xff]
        %v211 = vld [vmem:[%s196 + $0x40] sm:$0xff]
        %v212 = vld [vmem:[%s196 + $0x48] sm:$0xff]
        %v213 = vld [vmem:[%s196 + $0x50] sm:$0xff]
        %v214 = vld [vmem:[%s196 + $0x58] sm:$0xff]
        %v215 = vld [vmem:[%s196 + $0x60] sm:$0xff]
        %v216 = vld [vmem:[%s196 + $0x68] sm:$0xff]
        %v217 = vld [vmem:[%s196 + $0x70] sm:$0xff]
        %v218 = vld [vmem:[%s196 + $0x78] sm:$0xff]
        %v219 = vld [vmem:[%s196 + $0x80] sm:$0xff]
        %v220 = vld [vmem:[%s196 + $0x88] sm:$0xff]
        %v221 = vld [vmem:[%s196 + $0x90] sm:$0xff]
        %v222 = vld [vmem:[%s196 + $0x98] sm:$0xff]
        %v223 = vld [vmem:[%s196 + $0xa0] sm:$0xff]
        %v224 = vld [vmem:[%s196 + $0xa8] sm:$0xff]
        %v225 = vld [vmem:[%s196 + $0xb0] sm:$0xff]
        %v226 = vld [vmem:[%s196 + $0xb8] sm:$0xff]
        %v227 = vld [vmem:[%s196 + $0xc0] sm:$0xff]
        %v228 = vld [vmem:[%s196 + $0xc8] sm:$0xff]
        %v229 = vld [vmem:[%s196 + $0xd0] sm:$0xff]
        %v230 = vld [vmem:[%s196 + $0xd8] sm:$0xff]
        %v231 = vld [vmem:[%s196 + $0xe0] sm:$0xff]
        %v232 = vld [vmem:[%s196 + $0xe8] sm:$0xff]
        %v233 = vld [vmem:[%s196 + $0xf0] sm:$0xff]
        %v234 = vld [vmem:[%s196 + $0xf8] sm:$0xff]
        %vm235 = vcmask 261120
        %v236 = vsel %vm235, %v203, 0.0
        %237 = vadd.xlane.f32.xlu0 %v236
        %v238 = vpop.xlane.xlu0 %237
        %v239 = vsel %vm235, %v204, 0.0
        %240 = vadd.xlane.f32.xlu0 %v239
        %v241 = vpop.xlane.xlu0 %240
        %v242 = vsel %vm235, %v205, 0.0
        %243 = vadd.xlane.f32.xlu0 %v242
        %v244 = vpop.xlane.xlu0 %243
        %v245 = vsel %vm235, %v206, 0.0
        %246 = vadd.xlane.f32.xlu0 %v245
        %v247 = vpop.xlane.xlu0 %246
        %v248 = vsel %vm235, %v207, 0.0
        %249 = vadd.xlane.f32.xlu0 %v248
        %v250 = vpop.xlane.xlu0 %249
        %v251 = vsel %vm235, %v208, 0.0
        %252 = vadd.xlane.f32.xlu0 %v251
        %v253 = vpop.xlane.xlu0 %252
        %v254 = vsel %vm235, %v209, 0.0
        %255 = vadd.xlane.f32.xlu0 %v254
        %v256 = vpop.xlane.xlu0 %255
        %v257 = vsel %vm235, %v210, 0.0
        %258 = vadd.xlane.f32.xlu0 %v257
        %v259 = vpop.xlane.xlu0 %258
        %v260 = vsel %vm235, %v211, 0.0
        %261 = vadd.xlane.f32.xlu0 %v260
        %v262 = vpop.xlane.xlu0 %261
        %v263 = vsel %vm235, %v212, 0.0
        %264 = vadd.xlane.f32.xlu0 %v263
        %v265 = vpop.xlane.xlu0 %264
        %v266 = vsel %vm235, %v213, 0.0
        %267 = vadd.xlane.f32.xlu0 %v266
        %v268 = vpop.xlane.xlu0 %267
        %v269 = vsel %vm235, %v214, 0.0
        %270 = vadd.xlane.f32.xlu0 %v269
        %v271 = vpop.xlane.xlu0 %270
        %v272 = vsel %vm235, %v215, 0.0
        %273 = vadd.xlane.f32.xlu0 %v272
        %v274 = vpop.xlane.xlu0 %273
        %v275 = vsel %vm235, %v216, 0.0
        %276 = vadd.xlane.f32.xlu0 %v275
        %v277 = vpop.xlane.xlu0 %276
        %v278 = vsel %vm235, %v217, 0.0
        %279 = vadd.xlane.f32.xlu0 %v278
        %v280 = vpop.xlane.xlu0 %279
        %v281 = vsel %vm235, %v218, 0.0
        %282 = vadd.xlane.f32.xlu0 %v281
        %v283 = vpop.xlane.xlu0 %282
        %v284 = vsel %vm235, %v219, 0.0
        %285 = vadd.xlane.f32.xlu0 %v284
        %v286 = vpop.xlane.xlu0 %285
        %v287 = vsel %vm235, %v220, 0.0
        %288 = vadd.xlane.f32.xlu0 %v287
        %v289 = vpop.xlane.xlu0 %288
        %v290 = vsel %vm235, %v221, 0.0
        %291 = vadd.xlane.f32.xlu0 %v290
        %v292 = vpop.xlane.xlu0 %291
        %v293 = vsel %vm235, %v222, 0.0
        %294 = vadd.xlane.f32.xlu0 %v293
        %v295 = vpop.xlane.xlu0 %294
        %v296 = vsel %vm235, %v223, 0.0
        %297 = vadd.xlane.f32.xlu0 %v296
        %v298 = vpop.xlane.xlu0 %297
        %v299 = vsel %vm235, %v224, 0.0
        %300 = vadd.xlane.f32.xlu0 %v299
        %v301 = vpop.xlane.xlu0 %300
        %v302 = vsel %vm235, %v225, 0.0
        %303 = vadd.xlane.f32.xlu0 %v302
        %v304 = vpop.xlane.xlu0 %303
        %v305 = vsel %vm235, %v226, 0.0
        %306 = vadd.xlane.f32.xlu0 %v305
        %v307 = vpop.xlane.xlu0 %306
        %v308 = vsel %vm235, %v227, 0.0
        %309 = vadd.xlane.f32.xlu0 %v308
        %v310 = vpop.xlane.xlu0 %309
        %v311 = vsel %vm235, %v228, 0.0
        %312 = vadd.xlane.f32.xlu0 %v311
        %v313 = vpop.xlane.xlu0 %312
        %v314 = vsel %vm235, %v229, 0.0
        %315 = vadd.xlane.f32.xlu0 %v314
        %v316 = vpop.xlane.xlu0 %315
        %v317 = vsel %vm235, %v230, 0.0
        %318 = vadd.xlane.f32.xlu0 %v317
        %v319 = vpop.xlane.xlu0 %318
        %v320 = vsel %vm235, %v231, 0.0
        %321 = vadd.xlane.f32.xlu0 %v320
        %v322 = vpop.xlane.xlu0 %321
        %v323 = vsel %vm235, %v232, 0.0
        %324 = vadd.xlane.f32.xlu0 %v323
        %v325 = vpop.xlane.xlu0 %324
        %v326 = vsel %vm235, %v233, 0.0
        %327 = vadd.xlane.f32.xlu0 %v326
        %v328 = vpop.xlane.xlu0 %327
        %v329 = vsel %vm235, %v234, 0.0
        %330 = vadd.xlane.f32.xlu0 %v329
        %v331 = vpop.xlane.xlu0 %330
        %v332 = vrcp.pop 32.0
        %v333 = vmul.f32 32.0, %v332
        %v334 = vsub.f32 1.0, %v333
        %v335 = vmul.f32 %v332, %v334
        %v336 = vadd.f32 %v332, %v335
        %vm337 = vweird.f32 %v332
        %v338 = vsel %vm337, %v332, %v336
        %v339 = vmul.f32 %v238, %v338
        %v340 = vmul.f32 %v241, %v338
        %v341 = vmul.f32 %v244, %v338
        %v342 = vmul.f32 %v247, %v338
        %v343 = vmul.f32 %v250, %v338
        %v344 = vmul.f32 %v253, %v338
        %v345 = vmul.f32 %v256, %v338
        %v346 = vmul.f32 %v259, %v338
        %v347 = vmul.f32 %v262, %v338
        %v348 = vmul.f32 %v265, %v338
        %v349 = vmul.f32 %v268, %v338
        %v350 = vmul.f32 %v271, %v338
        %v351 = vmul.f32 %v274, %v338
        %v352 = vmul.f32 %v277, %v338
        %v353 = vmul.f32 %v280, %v338
        %v354 = vmul.f32 %v283, %v338
        %v355 = vmul.f32 %v286, %v338
        %v356 = vmul.f32 %v289, %v338
        %v357 = vmul.f32 %v292, %v338
        %v358 = vmul.f32 %v295, %v338
        %v359 = vmul.f32 %v298, %v338
        %v360 = vmul.f32 %v301, %v338
        %v361 = vmul.f32 %v304, %v338
        %v362 = vmul.f32 %v307, %v338
        %v363 = vmul.f32 %v310, %v338
        %v364 = vmul.f32 %v313, %v338
        %v365 = vmul.f32 %v316, %v338
        %v366 = vmul.f32 %v319, %v338
        %v367 = vmul.f32 %v322, %v338
        %v368 = vmul.f32 %v325, %v338
        %v369 = vmul.f32 %v328, %v338
        %v370 = vmul.f32 %v331, %v338
        %v371 = vsub.f32 %v203, %v339
        %v372 = vsub.f32 %v204, %v340
        %v373 = vsub.f32 %v205, %v341
        %v374 = vsub.f32 %v206, %v342
        %v375 = vsub.f32 %v207, %v343
        %v376 = vsub.f32 %v208, %v344
        %v377 = vsub.f32 %v209, %v345
        %v378 = vsub.f32 %v210, %v346
        %v379 = vsub.f32 %v211, %v347
        %v380 = vsub.f32 %v212, %v348
        %v381 = vsub.f32 %v213, %v349
        %v382 = vsub.f32 %v214, %v350
        %v383 = vsub.f32 %v215, %v351
        %v384 = vsub.f32 %v216, %v352
        %v385 = vsub.f32 %v217, %v353
        %v386 = vsub.f32 %v218, %v354
        %v387 = vsub.f32 %v219, %v355
        %v388 = vsub.f32 %v220, %v356
        %v389 = vsub.f32 %v221, %v357
        %v390 = vsub.f32 %v222, %v358
        %v391 = vsub.f32 %v223, %v359
        %v392 = vsub.f32 %v224, %v360
        %v393 = vsub.f32 %v225, %v361
        %v394 = vsub.f32 %v226, %v362
        %v395 = vsub.f32 %v227, %v363
        %v396 = vsub.f32 %v228, %v364
        %v397 = vsub.f32 %v229, %v365
        %v398 = vsub.f32 %v230, %v366
        %v399 = vsub.f32 %v231, %v367
        %v400 = vsub.f32 %v232, %v368
        %v401 = vsub.f32 %v233, %v369
        %v402 = vsub.f32 %v234, %v370
        %v403 = vmul.f32 %v371, %v371
        %v404 = vmul.f32 %v372, %v372
        %v405 = vmul.f32 %v373, %v373
        %v406 = vmul.f32 %v374, %v374
        %v407 = vmul.f32 %v375, %v375
        %v408 = vmul.f32 %v376, %v376
        %v409 = vmul.f32 %v377, %v377
        %v410 = vmul.f32 %v378, %v378
        %v411 = vmul.f32 %v379, %v379
        %v412 = vmul.f32 %v380, %v380
        %v413 = vmul.f32 %v381, %v381
        %v414 = vmul.f32 %v382, %v382
        %v415 = vmul.f32 %v383, %v383
        %v416 = vmul.f32 %v384, %v384
        %v417 = vmul.f32 %v385, %v385
        %v418 = vmul.f32 %v386, %v386
        %v419 = vmul.f32 %v387, %v387
        %v420 = vmul.f32 %v388, %v388
        %v421 = vmul.f32 %v389, %v389
        %v422 = vmul.f32 %v390, %v390
        %v423 = vmul.f32 %v391, %v391
        %v424 = vmul.f32 %v392, %v392
        %v425 = vmul.f32 %v393, %v393
        %v426 = vmul.f32 %v394, %v394
        %v427 = vmul.f32 %v395, %v395
        %v428 = vmul.f32 %v396, %v396
        %v429 = vmul.f32 %v397, %v397
        %v430 = vmul.f32 %v398, %v398
        %v431 = vmul.f32 %v399, %v399
        %v432 = vmul.f32 %v400, %v400
        %v433 = vmul.f32 %v401, %v401
        %v434 = vmul.f32 %v402, %v402
        %v435 = vsel %vm235, %v403, 0.0
        %436 = vadd.xlane.f32.xlu0 %v435
        %v437 = vpop.xlane.xlu0 %436
        %v438 = vsel %vm235, %v404, 0.0
        %439 = vadd.xlane.f32.xlu0 %v438
        %v440 = vpop.xlane.xlu0 %439
        %v441 = vsel %vm235, %v405, 0.0
        %442 = vadd.xlane.f32.xlu0 %v441
        %v443 = vpop.xlane.xlu0 %442
        %v444 = vsel %vm235, %v406, 0.0
        %445 = vadd.xlane.f32.xlu0 %v444
        %v446 = vpop.xlane.xlu0 %445
        %v447 = vsel %vm235, %v407, 0.0
        %448 = vadd.xlane.f32.xlu0 %v447
        %v449 = vpop.xlane.xlu0 %448
        %v450 = vsel %vm235, %v408, 0.0
        %451 = vadd.xlane.f32.xlu0 %v450
        %v452 = vpop.xlane.xlu0 %451
        %v453 = vsel %vm235, %v409, 0.0
        %454 = vadd.xlane.f32.xlu0 %v453
        %v455 = vpop.xlane.xlu0 %454
        %v456 = vsel %vm235, %v410, 0.0
        %457 = vadd.xlane.f32.xlu0 %v456
        %v458 = vpop.xlane.xlu0 %457
        %v459 = vsel %vm235, %v411, 0.0
        %460 = vadd.xlane.f32.xlu0 %v459
        %v461 = vpop.xlane.xlu0 %460
        %v462 = vsel %vm235, %v412, 0.0
        %463 = vadd.xlane.f32.xlu0 %v462
        %v464 = vpop.xlane.xlu0 %463
        %v465 = vsel %vm235, %v413, 0.0
        %466 = vadd.xlane.f32.xlu0 %v465
        %v467 = vpop.xlane.xlu0 %466
        %v468 = vsel %vm235, %v414, 0.0
        %469 = vadd.xlane.f32.xlu0 %v468
        %v470 = vpop.xlane.xlu0 %469
        %v471 = vsel %vm235, %v415, 0.0
        %472 = vadd.xlane.f32.xlu0 %v471
        %v473 = vpop.xlane.xlu0 %472
        %v474 = vsel %vm235, %v416, 0.0
        %475 = vadd.xlane.f32.xlu0 %v474
        %v476 = vpop.xlane.xlu0 %475
        %v477 = vsel %vm235, %v417, 0.0
        %478 = vadd.xlane.f32.xlu0 %v477
        %v479 = vpop.xlane.xlu0 %478
        %v480 = vsel %vm235, %v418, 0.0
        %481 = vadd.xlane.f32.xlu0 %v480
        %v482 = vpop.xlane.xlu0 %481
        %v483 = vsel %vm235, %v419, 0.0
        %484 = vadd.xlane.f32.xlu0 %v483
        %v485 = vpop.xlane.xlu0 %484
        %v486 = vsel %vm235, %v420, 0.0
        %487 = vadd.xlane.f32.xlu0 %v486
        %v488 = vpop.xlane.xlu0 %487
        %v489 = vsel %vm235, %v421, 0.0
        %490 = vadd.xlane.f32.xlu0 %v489
        %v491 = vpop.xlane.xlu0 %490
        %v492 = vsel %vm235, %v422, 0.0
        %493 = vadd.xlane.f32.xlu0 %v492
        %v494 = vpop.xlane.xlu0 %493
        %v495 = vsel %vm235, %v423, 0.0
        %496 = vadd.xlane.f32.xlu0 %v495
        %v497 = vpop.xlane.xlu0 %496
        %v498 = vsel %vm235, %v424, 0.0
        %499 = vadd.xlane.f32.xlu0 %v498
        %v500 = vpop.xlane.xlu0 %499
        %v501 = vsel %vm235, %v425, 0.0
        %502 = vadd.xlane.f32.xlu0 %v501
        %v503 = vpop.xlane.xlu0 %502
        %v504 = vsel %vm235, %v426, 0.0
        %505 = vadd.xlane.f32.xlu0 %v504
        %v506 = vpop.xlane.xlu0 %505
        %v507 = vsel %vm235, %v427, 0.0
        %508 = vadd.xlane.f32.xlu0 %v507
        %v509 = vpop.xlane.xlu0 %508
        %v510 = vsel %vm235, %v428, 0.0
        %511 = vadd.xlane.f32.xlu0 %v510
        %v512 = vpop.xlane.xlu0 %511
        %v513 = vsel %vm235, %v429, 0.0
        %514 = vadd.xlane.f32.xlu0 %v513
        %v515 = vpop.xlane.xlu0 %514
        %v516 = vsel %vm235, %v430, 0.0
        %517 = vadd.xlane.f32.xlu0 %v516
        %v518 = vpop.xlane.xlu0 %517
        %v519 = vsel %vm235, %v431, 0.0
        %520 = vadd.xlane.f32.xlu0 %v519
        %v521 = vpop.xlane.xlu0 %520
        %v522 = vsel %vm235, %v432, 0.0
        %523 = vadd.xlane.f32.xlu0 %v522
        %v524 = vpop.xlane.xlu0 %523
        %v525 = vsel %vm235, %v433, 0.0
        %526 = vadd.xlane.f32.xlu0 %v525
        %v527 = vpop.xlane.xlu0 %526
        %v528 = vsel %vm235, %v434, 0.0
        %529 = vadd.xlane.f32.xlu0 %v528
        %v530 = vpop.xlane.xlu0 %529
        %v531 = vmul.f32 %v437, %v338
        %v532 = vmul.f32 %v440, %v338
        %v533 = vmul.f32 %v443, %v338
        %v534 = vmul.f32 %v446, %v338
        %v535 = vmul.f32 %v449, %v338
        %v536 = vmul.f32 %v452, %v338
        %v537 = vmul.f32 %v455, %v338
        %v538 = vmul.f32 %v458, %v338
        %v539 = vmul.f32 %v461, %v338
        %v540 = vmul.f32 %v464, %v338
        %v541 = vmul.f32 %v467, %v338
        %v542 = vmul.f32 %v470, %v338
        %v543 = vmul.f32 %v473, %v338
        %v544 = vmul.f32 %v476, %v338
        %v545 = vmul.f32 %v479, %v338
        %v546 = vmul.f32 %v482, %v338
        %v547 = vmul.f32 %v485, %v338
        %v548 = vmul.f32 %v488, %v338
        %v549 = vmul.f32 %v491, %v338
        %v550 = vmul.f32 %v494, %v338
        %v551 = vmul.f32 %v497, %v338
        %v552 = vmul.f32 %v500, %v338
        %v553 = vmul.f32 %v503, %v338
        %v554 = vmul.f32 %v506, %v338
        %v555 = vmul.f32 %v509, %v338
        %v556 = vmul.f32 %v512, %v338
        %v557 = vmul.f32 %v515, %v338
        %v558 = vmul.f32 %v518, %v338
        %v559 = vmul.f32 %v521, %v338
        %v560 = vmul.f32 %v524, %v338
        %v561 = vmul.f32 %v527, %v338
        %v562 = vmul.f32 %v530, %v338
        %v563 = vadd.f32 %v531, 1e-05
        %v564 = vadd.f32 %v532, 1e-05
        %v565 = vadd.f32 %v533, 1e-05
        %v566 = vadd.f32 %v534, 1e-05
        %v567 = vadd.f32 %v535, 1e-05
        %v568 = vadd.f32 %v536, 1e-05
        %v569 = vadd.f32 %v537, 1e-05
        %v570 = vadd.f32 %v538, 1e-05
        %v571 = vadd.f32 %v539, 1e-05
        %v572 = vadd.f32 %v540, 1e-05
        %v573 = vadd.f32 %v541, 1e-05
        %v574 = vadd.f32 %v542, 1e-05
        %v575 = vadd.f32 %v543, 1e-05
        %v576 = vadd.f32 %v544, 1e-05
        %v577 = vadd.f32 %v545, 1e-05
        %v578 = vadd.f32 %v546, 1e-05
        %v579 = vadd.f32 %v547, 1e-05
        %v580 = vadd.f32 %v548, 1e-05
        %v581 = vadd.f32 %v549, 1e-05
        %v582 = vadd.f32 %v550, 1e-05
        %v583 = vadd.f32 %v551, 1e-05
        %v584 = vadd.f32 %v552, 1e-05
        %v585 = vadd.f32 %v553, 1e-05
        %v586 = vadd.f32 %v554, 1e-05
        %v587 = vadd.f32 %v555, 1e-05
        %v588 = vadd.f32 %v556, 1e-05
        %v589 = vadd.f32 %v557, 1e-05
        %v590 = vadd.f32 %v558, 1e-05
        %v591 = vadd.f32 %v559, 1e-05
        %v592 = vadd.f32 %v560, 1e-05
        %v593 = vadd.f32 %v561, 1e-05
        %v594 = vadd.f32 %v562, 1e-05
        %v595 = vrsqrt.pop %v563
        %v596 = vmul.f32 %v595, %v563
        %v597 = vmul.f32 %v596, %v595
        %v598 = vmul.f32 0.5, %v597
        %v599 = vsub.f32 1.5, %v598
        %v600 = vmul.f32 %v595, %v599
        %vm601 = vweird.f32 %v563
        %vm602 = vweird.f32 %v595
        %vm603 = vmor %vm601, %vm602
        %v604 = vsel %vm603, %v595, %v600
        %v605 = vrsqrt.pop %v564
        %v606 = vmul.f32 %v605, %v564
        %v607 = vmul.f32 %v606, %v605
        %v608 = vmul.f32 0.5, %v607
        %v609 = vsub.f32 1.5, %v608
        %v610 = vmul.f32 %v605, %v609
        %vm611 = vweird.f32 %v564
        %vm612 = vweird.f32 %v605
        %vm613 = vmor %vm611, %vm612
        %v614 = vsel %vm613, %v605, %v610
        %v615 = vrsqrt.pop %v565
        %v616 = vmul.f32 %v615, %v565
        %v617 = vmul.f32 %v616, %v615
        %v618 = vmul.f32 0.5, %v617
        %v619 = vsub.f32 1.5, %v618
        %v620 = vmul.f32 %v615, %v619
        %vm621 = vweird.f32 %v565
        %vm622 = vweird.f32 %v615
        %vm623 = vmor %vm621, %vm622
        %v624 = vsel %vm623, %v615, %v620
        %v625 = vrsqrt.pop %v566
        %v626 = vmul.f32 %v625, %v566
        %v627 = vmul.f32 %v626, %v625
        %v628 = vmul.f32 0.5, %v627
        %v629 = vsub.f32 1.5, %v628
        %v630 = vmul.f32 %v625, %v629
        %vm631 = vweird.f32 %v566
        %vm632 = vweird.f32 %v625
        %vm633 = vmor %vm631, %vm632
        %v634 = vsel %vm633, %v625, %v630
        %v635 = vrsqrt.pop %v567
        %v636 = vmul.f32 %v635, %v567
        %v637 = vmul.f32 %v636, %v635
        %v638 = vmul.f32 0.5, %v637
        %v639 = vsub.f32 1.5, %v638
        %v640 = vmul.f32 %v635, %v639
        %vm641 = vweird.f32 %v567
        %vm642 = vweird.f32 %v635
        %vm643 = vmor %vm641, %vm642
        %v644 = vsel %vm643, %v635, %v640
        %v645 = vrsqrt.pop %v568
        %v646 = vmul.f32 %v645, %v568
        %v647 = vmul.f32 %v646, %v645
        %v648 = vmul.f32 0.5, %v647
        %v649 = vsub.f32 1.5, %v648
        %v650 = vmul.f32 %v645, %v649
        %vm651 = vweird.f32 %v568
        %vm652 = vweird.f32 %v645
        %vm653 = vmor %vm651, %vm652
        %v654 = vsel %vm653, %v645, %v650
        %v655 = vrsqrt.pop %v569
        %v656 = vmul.f32 %v655, %v569
        %v657 = vmul.f32 %v656, %v655
        %v658 = vmul.f32 0.5, %v657
        %v659 = vsub.f32 1.5, %v658
        %v660 = vmul.f32 %v655, %v659
        %vm661 = vweird.f32 %v569
        %vm662 = vweird.f32 %v655
        %vm663 = vmor %vm661, %vm662
        %v664 = vsel %vm663, %v655, %v660
        %v665 = vrsqrt.pop %v570
        %v666 = vmul.f32 %v665, %v570
        %v667 = vmul.f32 %v666, %v665
        %v668 = vmul.f32 0.5, %v667
        %v669 = vsub.f32 1.5, %v668
        %v670 = vmul.f32 %v665, %v669
        %vm671 = vweird.f32 %v570
        %vm672 = vweird.f32 %v665
        %vm673 = vmor %vm671, %vm672
        %v674 = vsel %vm673, %v665, %v670
        %v675 = vrsqrt.pop %v571
        %v676 = vmul.f32 %v675, %v571
        %v677 = vmul.f32 %v676, %v675
        %v678 = vmul.f32 0.5, %v677
        %v679 = vsub.f32 1.5, %v678
        %v680 = vmul.f32 %v675, %v679
        %vm681 = vweird.f32 %v571
        %vm682 = vweird.f32 %v675
        %vm683 = vmor %vm681, %vm682
        %v684 = vsel %vm683, %v675, %v680
        %v685 = vrsqrt.pop %v572
        %v686 = vmul.f32 %v685, %v572
        %v687 = vmul.f32 %v686, %v685
        %v688 = vmul.f32 0.5, %v687
        %v689 = vsub.f32 1.5, %v688
        %v690 = vmul.f32 %v685, %v689
        %vm691 = vweird.f32 %v572
        %vm692 = vweird.f32 %v685
        %vm693 = vmor %vm691, %vm692
        %v694 = vsel %vm693, %v685, %v690
        %v695 = vrsqrt.pop %v573
        %v696 = vmul.f32 %v695, %v573
        %v697 = vmul.f32 %v696, %v695
        %v698 = vmul.f32 0.5, %v697
        %v699 = vsub.f32 1.5, %v698
        %v700 = vmul.f32 %v695, %v699
        %vm701 = vweird.f32 %v573
        %vm702 = vweird.f32 %v695
        %vm703 = vmor %vm701, %vm702
        %v704 = vsel %vm703, %v695, %v700
        %v705 = vrsqrt.pop %v574
        %v706 = vmul.f32 %v705, %v574
        %v707 = vmul.f32 %v706, %v705
        %v708 = vmul.f32 0.5, %v707
        %v709 = vsub.f32 1.5, %v708
        %v710 = vmul.f32 %v705, %v709
        %vm711 = vweird.f32 %v574
        %vm712 = vweird.f32 %v705
        %vm713 = vmor %vm711, %vm712
        %v714 = vsel %vm713, %v705, %v710
        %v715 = vrsqrt.pop %v575
        %v716 = vmul.f32 %v715, %v575
        %v717 = vmul.f32 %v716, %v715
        %v718 = vmul.f32 0.5, %v717
        %v719 = vsub.f32 1.5, %v718
        %v720 = vmul.f32 %v715, %v719
        %vm721 = vweird.f32 %v575
        %vm722 = vweird.f32 %v715
        %vm723 = vmor %vm721, %vm722
        %v724 = vsel %vm723, %v715, %v720
        %v725 = vrsqrt.pop %v576
        %v726 = vmul.f32 %v725, %v576
        %v727 = vmul.f32 %v726, %v725
        %v728 = vmul.f32 0.5, %v727
        %v729 = vsub.f32 1.5, %v728
        %v730 = vmul.f32 %v725, %v729
        %vm731 = vweird.f32 %v576
        %vm732 = vweird.f32 %v725
        %vm733 = vmor %vm731, %vm732
        %v734 = vsel %vm733, %v725, %v730
        %v735 = vrsqrt.pop %v577
        %v736 = vmul.f32 %v735, %v577
        %v737 = vmul.f32 %v736, %v735
        %v738 = vmul.f32 0.5, %v737
        %v739 = vsub.f32 1.5, %v738
        %v740 = vmul.f32 %v735, %v739
        %vm741 = vweird.f32 %v577
        %vm742 = vweird.f32 %v735
        %vm743 = vmor %vm741, %vm742
        %v744 = vsel %vm743, %v735, %v740
        %v745 = vrsqrt.pop %v578
        %v746 = vmul.f32 %v745, %v578
        %v747 = vmul.f32 %v746, %v745
        %v748 = vmul.f32 0.5, %v747
        %v749 = vsub.f32 1.5, %v748
        %v750 = vmul.f32 %v745, %v749
        %vm751 = vweird.f32 %v578
        %vm752 = vweird.f32 %v745
        %vm753 = vmor %vm751, %vm752
        %v754 = vsel %vm753, %v745, %v750
        %v755 = vrsqrt.pop %v579
        %v756 = vmul.f32 %v755, %v579
        %v757 = vmul.f32 %v756, %v755
        %v758 = vmul.f32 0.5, %v757
        %v759 = vsub.f32 1.5, %v758
        %v760 = vmul.f32 %v755, %v759
        %vm761 = vweird.f32 %v579
        %vm762 = vweird.f32 %v755
        %vm763 = vmor %vm761, %vm762
        %v764 = vsel %vm763, %v755, %v760
        %v765 = vrsqrt.pop %v580
        %v766 = vmul.f32 %v765, %v580
        %v767 = vmul.f32 %v766, %v765
        %v768 = vmul.f32 0.5, %v767
        %v769 = vsub.f32 1.5, %v768
        %v770 = vmul.f32 %v765, %v769
        %vm771 = vweird.f32 %v580
        %vm772 = vweird.f32 %v765
        %vm773 = vmor %vm771, %vm772
        %v774 = vsel %vm773, %v765, %v770
        %v775 = vrsqrt.pop %v581
        %v776 = vmul.f32 %v775, %v581
        %v777 = vmul.f32 %v776, %v775
        %v778 = vmul.f32 0.5, %v777
        %v779 = vsub.f32 1.5, %v778
        %v780 = vmul.f32 %v775, %v779
        %vm781 = vweird.f32 %v581
        %vm782 = vweird.f32 %v775
        %vm783 = vmor %vm781, %vm782
        %v784 = vsel %vm783, %v775, %v780
        %v785 = vrsqrt.pop %v582
        %v786 = vmul.f32 %v785, %v582
        %v787 = vmul.f32 %v786, %v785
        %v788 = vmul.f32 0.5, %v787
        %v789 = vsub.f32 1.5, %v788
        %v790 = vmul.f32 %v785, %v789
        %vm791 = vweird.f32 %v582
        %vm792 = vweird.f32 %v785
        %vm793 = vmor %vm791, %vm792
        %v794 = vsel %vm793, %v785, %v790
        %v795 = vrsqrt.pop %v583
        %v796 = vmul.f32 %v795, %v583
        %v797 = vmul.f32 %v796, %v795
        %v798 = vmul.f32 0.5, %v797
        %v799 = vsub.f32 1.5, %v798
        %v800 = vmul.f32 %v795, %v799
        %vm801 = vweird.f32 %v583
        %vm802 = vweird.f32 %v795
        %vm803 = vmor %vm801, %vm802
        %v804 = vsel %vm803, %v795, %v800
        %v805 = vrsqrt.pop %v584
        %v806 = vmul.f32 %v805, %v584
        %v807 = vmul.f32 %v806, %v805
        %v808 = vmul.f32 0.5, %v807
        %v809 = vsub.f32 1.5, %v808
        %v810 = vmul.f32 %v805, %v809
        %vm811 = vweird.f32 %v584
        %vm812 = vweird.f32 %v805
        %vm813 = vmor %vm811, %vm812
        %v814 = vsel %vm813, %v805, %v810
        %v815 = vrsqrt.pop %v585
        %v816 = vmul.f32 %v815, %v585
        %v817 = vmul.f32 %v816, %v815
        %v818 = vmul.f32 0.5, %v817
        %v819 = vsub.f32 1.5, %v818
        %v820 = vmul.f32 %v815, %v819
        %vm821 = vweird.f32 %v585
        %vm822 = vweird.f32 %v815
        %vm823 = vmor %vm821, %vm822
        %v824 = vsel %vm823, %v815, %v820
        %v825 = vrsqrt.pop %v586
        %v826 = vmul.f32 %v825, %v586
        %v827 = vmul.f32 %v826, %v825
        %v828 = vmul.f32 0.5, %v827
        %v829 = vsub.f32 1.5, %v828
        %v830 = vmul.f32 %v825, %v829
        %vm831 = vweird.f32 %v586
        %vm832 = vweird.f32 %v825
        %vm833 = vmor %vm831, %vm832
        %v834 = vsel %vm833, %v825, %v830
        %v835 = vrsqrt.pop %v587
        %v836 = vmul.f32 %v835, %v587
        %v837 = vmul.f32 %v836, %v835
        %v838 = vmul.f32 0.5, %v837
        %v839 = vsub.f32 1.5, %v838
        %v840 = vmul.f32 %v835, %v839
        %vm841 = vweird.f32 %v587
        %vm842 = vweird.f32 %v835
        %vm843 = vmor %vm841, %vm842
        %v844 = vsel %vm843, %v835, %v840
        %v845 = vrsqrt.pop %v588
        %v846 = vmul.f32 %v845, %v588
        %v847 = vmul.f32 %v846, %v845
        %v848 = vmul.f32 0.5, %v847
        %v849 = vsub.f32 1.5, %v848
        %v850 = vmul.f32 %v845, %v849
        %vm851 = vweird.f32 %v588
        %vm852 = vweird.f32 %v845
        %vm853 = vmor %vm851, %vm852
        %v854 = vsel %vm853, %v845, %v850
        %v855 = vrsqrt.pop %v589
        %v856 = vmul.f32 %v855, %v589
        %v857 = vmul.f32 %v856, %v855
        %v858 = vmul.f32 0.5, %v857
        %v859 = vsub.f32 1.5, %v858
        %v860 = vmul.f32 %v855, %v859
        %vm861 = vweird.f32 %v589
        %vm862 = vweird.f32 %v855
        %vm863 = vmor %vm861, %vm862
        %v864 = vsel %vm863, %v855, %v860
        %v865 = vrsqrt.pop %v590
        %v866 = vmul.f32 %v865, %v590
        %v867 = vmul.f32 %v866, %v865
        %v868 = vmul.f32 0.5, %v867
        %v869 = vsub.f32 1.5, %v868
        %v870 = vmul.f32 %v865, %v869
        %vm871 = vweird.f32 %v590
        %vm872 = vweird.f32 %v865
        %vm873 = vmor %vm871, %vm872
        %v874 = vsel %vm873, %v865, %v870
        %v875 = vrsqrt.pop %v591
        %v876 = vmul.f32 %v875, %v591
        %v877 = vmul.f32 %v876, %v875
        %v878 = vmul.f32 0.5, %v877
        %v879 = vsub.f32 1.5, %v878
        %v880 = vmul.f32 %v875, %v879
        %vm881 = vweird.f32 %v591
        %vm882 = vweird.f32 %v875
        %vm883 = vmor %vm881, %vm882
        %v884 = vsel %vm883, %v875, %v880
        %v885 = vrsqrt.pop %v592
        %v886 = vmul.f32 %v885, %v592
        %v887 = vmul.f32 %v886, %v885
        %v888 = vmul.f32 0.5, %v887
        %v889 = vsub.f32 1.5, %v888
        %v890 = vmul.f32 %v885, %v889
        %vm891 = vweird.f32 %v592
        %vm892 = vweird.f32 %v885
        %vm893 = vmor %vm891, %vm892
        %v894 = vsel %vm893, %v885, %v890
        %v895 = vrsqrt.pop %v593
        %v896 = vmul.f32 %v895, %v593
        %v897 = vmul.f32 %v896, %v895
        %v898 = vmul.f32 0.5, %v897
        %v899 = vsub.f32 1.5, %v898
        %v900 = vmul.f32 %v895, %v899
        %vm901 = vweird.f32 %v593
        %vm902 = vweird.f32 %v895
        %vm903 = vmor %vm901, %vm902
        %v904 = vsel %vm903, %v895, %v900
        %v905 = vrsqrt.pop %v594
        %v906 = vmul.f32 %v905, %v594
        %v907 = vmul.f32 %v906, %v905
        %v908 = vmul.f32 0.5, %v907
        %v909 = vsub.f32 1.5, %v908
        %v910 = vmul.f32 %v905, %v909
        %vm911 = vweird.f32 %v594
        %vm912 = vweird.f32 %v905
        %vm913 = vmor %vm911, %vm912
        %v914 = vsel %vm913, %v905, %v910
        %v915 = vmul.f32 %v371, %v604
        %v916 = vmul.f32 %v372, %v614
        %v917 = vmul.f32 %v373, %v624
        %v918 = vmul.f32 %v374, %v634
        %v919 = vmul.f32 %v375, %v644
        %v920 = vmul.f32 %v376, %v654
        %v921 = vmul.f32 %v377, %v664
        %v922 = vmul.f32 %v378, %v674
        %v923 = vmul.f32 %v379, %v684
        %v924 = vmul.f32 %v380, %v694
        %v925 = vmul.f32 %v381, %v704
        %v926 = vmul.f32 %v382, %v714
        %v927 = vmul.f32 %v383, %v724
        %v928 = vmul.f32 %v384, %v734
        %v929 = vmul.f32 %v385, %v744
        %v930 = vmul.f32 %v386, %v754
        %v931 = vmul.f32 %v387, %v764
        %v932 = vmul.f32 %v388, %v774
        %v933 = vmul.f32 %v389, %v784
        %v934 = vmul.f32 %v390, %v794
        %v935 = vmul.f32 %v391, %v804
        %v936 = vmul.f32 %v392, %v814
        %v937 = vmul.f32 %v393, %v824
        %v938 = vmul.f32 %v394, %v834
        %v939 = vmul.f32 %v395, %v844
        %v940 = vmul.f32 %v396, %v854
        %v941 = vmul.f32 %v397, %v864
        %v942 = vmul.f32 %v398, %v874
        %v943 = vmul.f32 %v399, %v884
        %v944 = vmul.f32 %v400, %v894
        %v945 = vmul.f32 %v401, %v904
        %v946 = vmul.f32 %v402, %v914
        %v947 = vperm.slane %v200, 1
        %v948 = vmul.f32 %v915, %v947
        %v949 = vmul.f32 %v916, %v947
        %v950 = vmul.f32 %v917, %v947
        %v951 = vmul.f32 %v918, %v947
        %v952 = vmul.f32 %v919, %v947
        %v953 = vmul.f32 %v920, %v947
        %v954 = vmul.f32 %v921, %v947
        %v955 = vmul.f32 %v922, %v947
        %v956 = vmul.f32 %v923, %v947
        %v957 = vmul.f32 %v924, %v947
        %v958 = vmul.f32 %v925, %v947
        %v959 = vmul.f32 %v926, %v947
        %v960 = vmul.f32 %v927, %v947
        %v961 = vmul.f32 %v928, %v947
        %v962 = vmul.f32 %v929, %v947
        %v963 = vmul.f32 %v930, %v947
        %v964 = vmul.f32 %v931, %v947
        %v965 = vmul.f32 %v932, %v947
        %v966 = vmul.f32 %v933, %v947
        %v967 = vmul.f32 %v934, %v947
        %v968 = vmul.f32 %v935, %v947
        %v969 = vmul.f32 %v936, %v947
        %v970 = vmul.f32 %v937, %v947
        %v971 = vmul.f32 %v938, %v947
        %v972 = vmul.f32 %v939, %v947
        %v973 = vmul.f32 %v940, %v947
        %v974 = vmul.f32 %v941, %v947
        %v975 = vmul.f32 %v942, %v947
        %v976 = vmul.f32 %v943, %v947
        %v977 = vmul.f32 %v944, %v947
        %v978 = vmul.f32 %v945, %v947
        %v979 = vmul.f32 %v946, %v947
        %v980 = vperm.slane %v200, 2
        %v981 = vadd.f32 %v948, %v980
        %v982 = vadd.f32 %v949, %v980
        %v983 = vadd.f32 %v950, %v980
        %v984 = vadd.f32 %v951, %v980
        %v985 = vadd.f32 %v952, %v980
        %v986 = vadd.f32 %v953, %v980
        %v987 = vadd.f32 %v954, %v980
        %v988 = vadd.f32 %v955, %v980
        %v989 = vadd.f32 %v956, %v980
        %v990 = vadd.f32 %v957, %v980
        %v991 = vadd.f32 %v958, %v980
        %v992 = vadd.f32 %v959, %v980
        %v993 = vadd.f32 %v960, %v980
        %v994 = vadd.f32 %v961, %v980
        %v995 = vadd.f32 %v962, %v980
        %v996 = vadd.f32 %v963, %v980
        %v997 = vadd.f32 %v964, %v980
        %v998 = vadd.f32 %v965, %v980
        %v999 = vadd.f32 %v966, %v980
        %v1000 = vadd.f32 %v967, %v980
        %v1001 = vadd.f32 %v968, %v980
        %v1002 = vadd.f32 %v969, %v980
        %v1003 = vadd.f32 %v970, %v980
        %v1004 = vadd.f32 %v971, %v980
        %v1005 = vadd.f32 %v972, %v980
        %v1006 = vadd.f32 %v973, %v980
        %v1007 = vadd.f32 %v974, %v980
        %v1008 = vadd.f32 %v975, %v980
        %v1009 = vadd.f32 %v976, %v980
        %v1010 = vadd.f32 %v977, %v980
        %v1011 = vadd.f32 %v978, %v980
        %v1012 = vadd.f32 %v979, %v980
        %v1013 = vpack.c.bf16 %v982, %v981
        %v1014 = vpack.c.bf16 %v984, %v983
        %v1015 = vpack.c.bf16 %v986, %v985
        %v1016 = vpack.c.bf16 %v988, %v987
        %v1017 = vpack.c.bf16 %v990, %v989
        %v1018 = vpack.c.bf16 %v992, %v991
        %v1019 = vpack.c.bf16 %v994, %v993
        %v1020 = vpack.c.bf16 %v996, %v995
        %v1021 = vpack.c.bf16 %v998, %v997
        %v1022 = vpack.c.bf16 %v1000, %v999
        %v1023 = vpack.c.bf16 %v1002, %v1001
        %v1024 = vpack.c.bf16 %v1004, %v1003
        %v1025 = vpack.c.bf16 %v1006, %v1005
        %v1026 = vpack.c.bf16 %v1008, %v1007
        %v1027 = vpack.c.bf16 %v1010, %v1009
        %v1028 = vpack.c.bf16 %v1012, %v1011
        %v1029 = vld [vmem:[%s2] sm:$0xff]
        %v1030 = vld [vmem:[%s2 + $0x8] sm:$0xf]
        %v1031 = vld [vmem:[%s2 + $0xc] sm:$0xff]
        %v1032 = vld [vmem:[%s2 + $0x14] sm:$0xf]
        %v1033 = vld [vmem:[%s2 + $0x18] sm:$0xff]
        %v1034 = vld [vmem:[%s2 + $0x20] sm:$0xf]
        %v1035 = vld [vmem:[%s2 + $0x24] sm:$0xff]
        %v1036 = vld [vmem:[%s2 + $0x2c] sm:$0xf]
        %v1037 = vperm.slane %v200, 0
        %v1038 = vperm.slane %v201, 0
        %v1039 = vperm.slane %v202, 0
        %v1048 = vunpack.c.l.b16 %v1029
        %v1049 = vunpack.c.h.b16 %v1029
        %v1050 = vunpack.c.l.b16 %v1030
        %v1051 = vunpack.c.l.b16 %v1031
        %v1052 = vunpack.c.h.b16 %v1031
        %v1053 = vunpack.c.l.b16 %v1032
        %v1054 = vunpack.c.l.b16 %v1033
        %v1055 = vunpack.c.h.b16 %v1033
        %v1056 = vunpack.c.l.b16 %v1034
        %v1057 = vunpack.c.l.b16 %v1035
        %v1058 = vunpack.c.h.b16 %v1035
        %v1059 = vunpack.c.l.b16 %v1036
        %v1060 = vpack.c.b16 %v1051, %v1048
        %v1061 = vpack.c.b16 %v1052, %v1049
        %v1062 = vpack.c.b16 %v1053, %v1050
        %v1063 = vpack.c.b16 %v1057, %v1054
        %v1064 = vpack.c.b16 %v1058, %v1055
        %v1065 = vpack.c.b16 %v1059, %v1056
        %v1073 = vsel %vm235, %v1013, 0
        %v1076 = vsel %vm235, %v1014, 0
        %v1079 = vsel %vm235, %v1015, 0
        %v1082 = vsel %vm235, %v1016, 0
        %v1085 = vsel %vm235, %v1017, 0
        %v1088 = vsel %vm235, %v1018, 0
        %v1091 = vsel %vm235, %v1019, 0
        %v1094 = vsel %vm235, %v1020, 0
        %v1097 = vsel %vm235, %v1021, 0
        %v1100 = vsel %vm235, %v1022, 0
        %v1103 = vsel %vm235, %v1023, 0
        %v1106 = vsel %vm235, %v1024, 0
        %v1109 = vsel %vm235, %v1025, 0
        %v1112 = vsel %vm235, %v1026, 0
        %v1115 = vsel %vm235, %v1027, 0
        %v1118 = vsel %vm235, %v1028, 0
        %1120 = vmatpush.bf16.msra.mxu0 0
        %1121 = vmatpush.bf16.msra.mxu0 0
        %1122 = vmatpush.bf16.msra.mxu0 0
        %1123 = vmatpush.bf16.msra.mxu0 0
        %1124 = vmatpush.bf16.msra.mxu0 0
        %1125 = vmatpush.bf16.msra.mxu0 0
        %1126 = vmatpush.bf16.msra.mxu0 %v1063
        %1127 = vmatpush.bf16.msra.mxu0 %v1060
        %1128 = vmatmul.bf16.gmra.mxu0 %v1073
        %v1129 = vpop.f32.mrf.mxu0
        %v1130 = vadd.f32 %v1037, %v1129
        %v1131 = vpop.f32.mrf.mxu0
        %v1132 = vadd.f32 %v1037, %v1131
        %1133 = vmatmul.bf16.gmra.mxu0 %v1076
        %v1134 = vpop.f32.mrf.mxu0
        %v1135 = vadd.f32 %v1037, %v1134
        %v1136 = vpop.f32.mrf.mxu0
        %v1137 = vadd.f32 %v1037, %v1136
        %1138 = vmatmul.bf16.gmra.mxu0 %v1079
        %v1139 = vpop.f32.mrf.mxu0
        %v1140 = vadd.f32 %v1037, %v1139
        %v1141 = vpop.f32.mrf.mxu0
        %v1142 = vadd.f32 %v1037, %v1141
        %1143 = vmatmul.bf16.gmra.mxu0 %v1082
        %v1144 = vpop.f32.mrf.mxu0
        %v1145 = vadd.f32 %v1037, %v1144
        %v1146 = vpop.f32.mrf.mxu0
        %v1147 = vadd.f32 %v1037, %v1146
        %1148 = vmatmul.bf16.gmra.mxu0 %v1085
        %v1149 = vpop.f32.mrf.mxu0
        %v1150 = vadd.f32 %v1037, %v1149
        %v1151 = vpop.f32.mrf.mxu0
        %v1152 = vadd.f32 %v1037, %v1151
        %1153 = vmatmul.bf16.gmra.mxu0 %v1088
        %v1154 = vpop.f32.mrf.mxu0
        %v1155 = vadd.f32 %v1037, %v1154
        %v1156 = vpop.f32.mrf.mxu0
        %v1157 = vadd.f32 %v1037, %v1156
        %1158 = vmatmul.bf16.gmra.mxu0 %v1091
        %v1159 = vpop.f32.mrf.mxu0
        %v1160 = vadd.f32 %v1037, %v1159
        %v1161 = vpop.f32.mrf.mxu0
        %v1162 = vadd.f32 %v1037, %v1161
        %1163 = vmatmul.bf16.gmra.mxu0 %v1094
        %v1164 = vpop.f32.mrf.mxu0
        %v1165 = vadd.f32 %v1037, %v1164
        %v1166 = vpop.f32.mrf.mxu0
        %v1167 = vadd.f32 %v1037, %v1166
        %1168 = vmatmul.bf16.gmra.mxu0 %v1097
        %v1169 = vpop.f32.mrf.mxu0
        %v1170 = vadd.f32 %v1037, %v1169
        %v1171 = vpop.f32.mrf.mxu0
        %v1172 = vadd.f32 %v1037, %v1171
        %1173 = vmatmul.bf16.gmra.mxu0 %v1100
        %v1174 = vpop.f32.mrf.mxu0
        %v1175 = vadd.f32 %v1037, %v1174
        %v1176 = vpop.f32.mrf.mxu0
        %v1177 = vadd.f32 %v1037, %v1176
        %1178 = vmatmul.bf16.gmra.mxu0 %v1103
        %v1179 = vpop.f32.mrf.mxu0
        %v1180 = vadd.f32 %v1037, %v1179
        %v1181 = vpop.f32.mrf.mxu0
        %v1182 = vadd.f32 %v1037, %v1181
        %1183 = vmatmul.bf16.gmra.mxu0 %v1106
        %v1184 = vpop.f32.mrf.mxu0
        %v1185 = vadd.f32 %v1037, %v1184
        %v1186 = vpop.f32.mrf.mxu0
        %v1187 = vadd.f32 %v1037, %v1186
        %1188 = vmatmul.bf16.gmra.mxu0 %v1109
        %v1189 = vpop.f32.mrf.mxu0
        %v1190 = vadd.f32 %v1037, %v1189
        %v1191 = vpop.f32.mrf.mxu0
        %v1192 = vadd.f32 %v1037, %v1191
        %1193 = vmatmul.bf16.gmra.mxu0 %v1112
        %v1194 = vpop.f32.mrf.mxu0
        %v1195 = vadd.f32 %v1037, %v1194
        %v1196 = vpop.f32.mrf.mxu0
        %v1197 = vadd.f32 %v1037, %v1196
        %1198 = vmatmul.bf16.gmra.mxu0 %v1115
        %v1199 = vpop.f32.mrf.mxu0
        %v1200 = vadd.f32 %v1037, %v1199
        %v1201 = vpop.f32.mrf.mxu0
        %v1202 = vadd.f32 %v1037, %v1201
        %1203 = vmatmul.bf16.gmra.mxu0 %v1118
        %v1204 = vpop.f32.mrf.mxu0
        %v1205 = vadd.f32 %v1037, %v1204
        %v1206 = vpop.f32.mrf.mxu0
        %v1207 = vadd.f32 %v1037, %v1206
        %1208 = vdwg.mxu0
        %1209 = vmatpush.bf16.msra.mxu0 0
        %1210 = vmatpush.bf16.msra.mxu0 0
        %1211 = vmatpush.bf16.msra.mxu0 0
        %1212 = vmatpush.bf16.msra.mxu0 0
        %1213 = vmatpush.bf16.msra.mxu0 0
        %1214 = vmatpush.bf16.msra.mxu0 0
        %1215 = vmatpush.bf16.msra.mxu0 %v1064
        %1216 = vmatpush.bf16.msra.mxu0 %v1061
        %1217 = vmatmul.bf16.gmra.mxu0 %v1073
        %v1218 = vpop.f32.mrf.mxu0
        %v1219 = vadd.f32 %v1038, %v1218
        %v1220 = vpop.f32.mrf.mxu0
        %v1221 = vadd.f32 %v1038, %v1220
        %1222 = vmatmul.bf16.gmra.mxu0 %v1076
        %v1223 = vpop.f32.mrf.mxu0
        %v1224 = vadd.f32 %v1038, %v1223
        %v1225 = vpop.f32.mrf.mxu0
        %v1226 = vadd.f32 %v1038, %v1225
        %1227 = vmatmul.bf16.gmra.mxu0 %v1079
        %v1228 = vpop.f32.mrf.mxu0
        %v1229 = vadd.f32 %v1038, %v1228
        %v1230 = vpop.f32.mrf.mxu0
        %v1231 = vadd.f32 %v1038, %v1230
        %1232 = vmatmul.bf16.gmra.mxu0 %v1082
        %v1233 = vpop.f32.mrf.mxu0
        %v1234 = vadd.f32 %v1038, %v1233
        %v1235 = vpop.f32.mrf.mxu0
        %v1236 = vadd.f32 %v1038, %v1235
        %1237 = vmatmul.bf16.gmra.mxu0 %v1085
        %v1238 = vpop.f32.mrf.mxu0
        %v1239 = vadd.f32 %v1038, %v1238
        %v1240 = vpop.f32.mrf.mxu0
        %v1241 = vadd.f32 %v1038, %v1240
        %1242 = vmatmul.bf16.gmra.mxu0 %v1088
        %v1243 = vpop.f32.mrf.mxu0
        %v1244 = vadd.f32 %v1038, %v1243
        %v1245 = vpop.f32.mrf.mxu0
        %v1246 = vadd.f32 %v1038, %v1245
        %1247 = vmatmul.bf16.gmra.mxu0 %v1091
        %v1248 = vpop.f32.mrf.mxu0
        %v1249 = vadd.f32 %v1038, %v1248
        %v1250 = vpop.f32.mrf.mxu0
        %v1251 = vadd.f32 %v1038, %v1250
        %1252 = vmatmul.bf16.gmra.mxu0 %v1094
        %v1253 = vpop.f32.mrf.mxu0
        %v1254 = vadd.f32 %v1038, %v1253
        %v1255 = vpop.f32.mrf.mxu0
        %v1256 = vadd.f32 %v1038, %v1255
        %1257 = vmatmul.bf16.gmra.mxu0 %v1097
        %v1258 = vpop.f32.mrf.mxu0
        %v1259 = vadd.f32 %v1038, %v1258
        %v1260 = vpop.f32.mrf.mxu0
        %v1261 = vadd.f32 %v1038, %v1260
        %1262 = vmatmul.bf16.gmra.mxu0 %v1100
        %v1263 = vpop.f32.mrf.mxu0
        %v1264 = vadd.f32 %v1038, %v1263
        %v1265 = vpop.f32.mrf.mxu0
        %v1266 = vadd.f32 %v1038, %v1265
        %1267 = vmatmul.bf16.gmra.mxu0 %v1103
        %v1268 = vpop.f32.mrf.mxu0
        %v1269 = vadd.f32 %v1038, %v1268
        %v1270 = vpop.f32.mrf.mxu0
        %v1271 = vadd.f32 %v1038, %v1270
        %1272 = vmatmul.bf16.gmra.mxu0 %v1106
        %v1273 = vpop.f32.mrf.mxu0
        %v1274 = vadd.f32 %v1038, %v1273
        %v1275 = vpop.f32.mrf.mxu0
        %v1276 = vadd.f32 %v1038, %v1275
        %1277 = vmatmul.bf16.gmra.mxu0 %v1109
        %v1278 = vpop.f32.mrf.mxu0
        %v1279 = vadd.f32 %v1038, %v1278
        %v1280 = vpop.f32.mrf.mxu0
        %v1281 = vadd.f32 %v1038, %v1280
        %1282 = vmatmul.bf16.gmra.mxu0 %v1112
        %v1283 = vpop.f32.mrf.mxu0
        %v1284 = vadd.f32 %v1038, %v1283
        %v1285 = vpop.f32.mrf.mxu0
        %v1286 = vadd.f32 %v1038, %v1285
        %1287 = vmatmul.bf16.gmra.mxu0 %v1115
        %v1288 = vpop.f32.mrf.mxu0
        %v1289 = vadd.f32 %v1038, %v1288
        %v1290 = vpop.f32.mrf.mxu0
        %v1291 = vadd.f32 %v1038, %v1290
        %1292 = vmatmul.bf16.gmra.mxu0 %v1118
        %v1293 = vpop.f32.mrf.mxu0
        %v1294 = vadd.f32 %v1038, %v1293
        %v1295 = vpop.f32.mrf.mxu0
        %v1296 = vadd.f32 %v1038, %v1295
        %1297 = vdwg.mxu0
        %1298 = vmatpush.bf16.msra.mxu0 0
        %1299 = vmatpush.bf16.msra.mxu0 0
        %1300 = vmatpush.bf16.msra.mxu0 0
        %1301 = vmatpush.bf16.msra.mxu0 0
        %1302 = vmatpush.bf16.msra.mxu0 0
        %1303 = vmatpush.bf16.msra.mxu0 0
        %1304 = vmatpush.bf16.msra.mxu0 %v1065
        %1305 = vmatpush.bf16.msra.mxu0 %v1062
        %1306 = vmatmul.bf16.gmra.mxu0 %v1073
        %v1307 = vpop.f32.mrf.mxu0
        %v1308 = vadd.f32 %v1039, %v1307
        %v1309 = vpop.f32.mrf.mxu0
        %v1310 = vadd.f32 %v1039, %v1309
        %1311 = vmatmul.bf16.gmra.mxu0 %v1076
        %v1312 = vpop.f32.mrf.mxu0
        %v1313 = vadd.f32 %v1039, %v1312
        %v1314 = vpop.f32.mrf.mxu0
        %v1315 = vadd.f32 %v1039, %v1314
        %1316 = vmatmul.bf16.gmra.mxu0 %v1079
        %v1317 = vpop.f32.mrf.mxu0
        %v1318 = vadd.f32 %v1039, %v1317
        %v1319 = vpop.f32.mrf.mxu0
        %v1320 = vadd.f32 %v1039, %v1319
        %1321 = vmatmul.bf16.gmra.mxu0 %v1082
        %v1322 = vpop.f32.mrf.mxu0
        %v1323 = vadd.f32 %v1039, %v1322
        %v1324 = vpop.f32.mrf.mxu0
        %v1325 = vadd.f32 %v1039, %v1324
        %1326 = vmatmul.bf16.gmra.mxu0 %v1085
        %v1327 = vpop.f32.mrf.mxu0
        %v1328 = vadd.f32 %v1039, %v1327
        %v1329 = vpop.f32.mrf.mxu0
        %v1330 = vadd.f32 %v1039, %v1329
        %1331 = vmatmul.bf16.gmra.mxu0 %v1088
        %v1332 = vpop.f32.mrf.mxu0
        %v1333 = vadd.f32 %v1039, %v1332
        %v1334 = vpop.f32.mrf.mxu0
        %v1335 = vadd.f32 %v1039, %v1334
        %1336 = vmatmul.bf16.gmra.mxu0 %v1091
        %v1337 = vpop.f32.mrf.mxu0
        %v1338 = vadd.f32 %v1039, %v1337
        %v1339 = vpop.f32.mrf.mxu0
        %v1340 = vadd.f32 %v1039, %v1339
        %1341 = vmatmul.bf16.gmra.mxu0 %v1094
        %v1342 = vpop.f32.mrf.mxu0
        %v1343 = vadd.f32 %v1039, %v1342
        %v1344 = vpop.f32.mrf.mxu0
        %v1345 = vadd.f32 %v1039, %v1344
        %1346 = vmatmul.bf16.gmra.mxu0 %v1097
        %v1347 = vpop.f32.mrf.mxu0
        %v1348 = vadd.f32 %v1039, %v1347
        %v1349 = vpop.f32.mrf.mxu0
        %v1350 = vadd.f32 %v1039, %v1349
        %1351 = vmatmul.bf16.gmra.mxu0 %v1100
        %v1352 = vpop.f32.mrf.mxu0
        %v1353 = vadd.f32 %v1039, %v1352
        %v1354 = vpop.f32.mrf.mxu0
        %v1355 = vadd.f32 %v1039, %v1354
        %1356 = vmatmul.bf16.gmra.mxu0 %v1103
        %v1357 = vpop.f32.mrf.mxu0
        %v1358 = vadd.f32 %v1039, %v1357
        %v1359 = vpop.f32.mrf.mxu0
        %v1360 = vadd.f32 %v1039, %v1359
        %1361 = vmatmul.bf16.gmra.mxu0 %v1106
        %v1362 = vpop.f32.mrf.mxu0
        %v1363 = vadd.f32 %v1039, %v1362
        %v1364 = vpop.f32.mrf.mxu0
        %v1365 = vadd.f32 %v1039, %v1364
        %1366 = vmatmul.bf16.gmra.mxu0 %v1109
        %v1367 = vpop.f32.mrf.mxu0
        %v1368 = vadd.f32 %v1039, %v1367
        %v1369 = vpop.f32.mrf.mxu0
        %v1370 = vadd.f32 %v1039, %v1369
        %1371 = vmatmul.bf16.gmra.mxu0 %v1112
        %v1372 = vpop.f32.mrf.mxu0
        %v1373 = vadd.f32 %v1039, %v1372
        %v1374 = vpop.f32.mrf.mxu0
        %v1375 = vadd.f32 %v1039, %v1374
        %1376 = vmatmul.bf16.gmra.mxu0 %v1115
        %v1377 = vpop.f32.mrf.mxu0
        %v1378 = vadd.f32 %v1039, %v1377
        %v1379 = vpop.f32.mrf.mxu0
        %v1380 = vadd.f32 %v1039, %v1379
        %1381 = vmatmul.bf16.gmra.mxu0 %v1118
        %v1382 = vpop.f32.mrf.mxu0
        %v1383 = vadd.f32 %v1039, %v1382
        %v1384 = vpop.f32.mrf.mxu0
        %v1385 = vadd.f32 %v1039, %v1384
        %1386 = vdwg.mxu0
        %v1387 = vpack.c.bf16 %v1219, %v1130
        %v1388 = vpack.c.bf16 %v1308, %v1308
        %v1389 = vpack.c.bf16 %v1221, %v1132
        %v1390 = vpack.c.bf16 %v1310, %v1310
        %v1391 = vpack.c.bf16 %v1224, %v1135
        %v1392 = vpack.c.bf16 %v1313, %v1313
        %v1393 = vpack.c.bf16 %v1226, %v1137
        %v1394 = vpack.c.bf16 %v1315, %v1315
        %v1395 = vpack.c.bf16 %v1229, %v1140
        %v1396 = vpack.c.bf16 %v1318, %v1318
        %v1397 = vpack.c.bf16 %v1231, %v1142
        %v1398 = vpack.c.bf16 %v1320, %v1320
        %v1399 = vpack.c.bf16 %v1234, %v1145
        %v1400 = vpack.c.bf16 %v1323, %v1323
        %v1401 = vpack.c.bf16 %v1236, %v1147
        %v1402 = vpack.c.bf16 %v1325, %v1325
        %v1403 = vpack.c.bf16 %v1239, %v1150
        %v1404 = vpack.c.bf16 %v1328, %v1328
        %v1405 = vpack.c.bf16 %v1241, %v1152
        %v1406 = vpack.c.bf16 %v1330, %v1330
        %v1407 = vpack.c.bf16 %v1244, %v1155
        %v1408 = vpack.c.bf16 %v1333, %v1333
        %v1409 = vpack.c.bf16 %v1246, %v1157
        %v1410 = vpack.c.bf16 %v1335, %v1335
        %v1411 = vpack.c.bf16 %v1249, %v1160
        %v1412 = vpack.c.bf16 %v1338, %v1338
        %v1413 = vpack.c.bf16 %v1251, %v1162
        %v1414 = vpack.c.bf16 %v1340, %v1340
        %v1415 = vpack.c.bf16 %v1254, %v1165
        %v1416 = vpack.c.bf16 %v1343, %v1343
        %v1417 = vpack.c.bf16 %v1256, %v1167
        %v1418 = vpack.c.bf16 %v1345, %v1345
        %v1419 = vpack.c.bf16 %v1259, %v1170
        %v1420 = vpack.c.bf16 %v1348, %v1348
        %v1421 = vpack.c.bf16 %v1261, %v1172
        %v1422 = vpack.c.bf16 %v1350, %v1350
        %v1423 = vpack.c.bf16 %v1264, %v1175
        %v1424 = vpack.c.bf16 %v1353, %v1353
        %v1425 = vpack.c.bf16 %v1266, %v1177
        %v1426 = vpack.c.bf16 %v1355, %v1355
        %v1427 = vpack.c.bf16 %v1269, %v1180
        %v1428 = vpack.c.bf16 %v1358, %v1358
        %v1429 = vpack.c.bf16 %v1271, %v1182
        %v1430 = vpack.c.bf16 %v1360, %v1360
        %v1431 = vpack.c.bf16 %v1274, %v1185
        %v1432 = vpack.c.bf16 %v1363, %v1363
        %v1433 = vpack.c.bf16 %v1276, %v1187
        %v1434 = vpack.c.bf16 %v1365, %v1365
        %v1435 = vpack.c.bf16 %v1279, %v1190
        %v1436 = vpack.c.bf16 %v1368, %v1368
        %v1437 = vpack.c.bf16 %v1281, %v1192
        %v1438 = vpack.c.bf16 %v1370, %v1370
        %v1439 = vpack.c.bf16 %v1284, %v1195
        %v1440 = vpack.c.bf16 %v1373, %v1373
        %v1441 = vpack.c.bf16 %v1286, %v1197
        %v1442 = vpack.c.bf16 %v1375, %v1375
        %v1443 = vpack.c.bf16 %v1289, %v1200
        %v1444 = vpack.c.bf16 %v1378, %v1378
        %v1445 = vpack.c.bf16 %v1291, %v1202
        %v1446 = vpack.c.bf16 %v1380, %v1380
        %v1447 = vpack.c.bf16 %v1294, %v1205
        %v1448 = vpack.c.bf16 %v1383, %v1383
        %v1449 = vpack.c.bf16 %v1296, %v1207
        %v1450 = vpack.c.bf16 %v1385, %v1385
        %1451 = vst [vmem:[#allocation2] sm:$0xff] %v1387
        %1452 = vst [vmem:[#allocation2 + $0x8] sm:$0xf] %v1388
        %1453 = vst [vmem:[#allocation2 + $0xc] sm:$0xff] %v1389
        %1454 = vst [vmem:[#allocation2 + $0x14] sm:$0xf] %v1390
        %1455 = vst [vmem:[#allocation2 + $0x18] sm:$0xff] %v1391
        %1456 = vst [vmem:[#allocation2 + $0x20] sm:$0xf] %v1392
        %1457 = vst [vmem:[#allocation2 + $0x24] sm:$0xff] %v1393
        %1458 = vst [vmem:[#allocation2 + $0x2c] sm:$0xf] %v1394
        %1459 = vst [vmem:[#allocation2 + $0x30] sm:$0xff] %v1395
        %1460 = vst [vmem:[#allocation2 + $0x38] sm:$0xf] %v1396
        %1461 = vst [vmem:[#allocation2 + $0x3c] sm:$0xff] %v1397
        %1462 = vst [vmem:[#allocation2 + $0x44] sm:$0xf] %v1398
        %1463 = vst [vmem:[#allocation2 + $0x48] sm:$0xff] %v1399
        %1464 = vst [vmem:[#allocation2 + $0x50] sm:$0xf] %v1400
        %1465 = vst [vmem:[#allocation2 + $0x54] sm:$0xff] %v1401
        %1466 = vst [vmem:[#allocation2 + $0x5c] sm:$0xf] %v1402
        %1467 = vst [vmem:[#allocation2 + $0x60] sm:$0xff] %v1403
        %1468 = vst [vmem:[#allocation2 + $0x68] sm:$0xf] %v1404
        %1469 = vst [vmem:[#allocation2 + $0x6c] sm:$0xff] %v1405
        %1470 = vst [vmem:[#allocation2 + $0x74] sm:$0xf] %v1406
        %1471 = vst [vmem:[#allocation2 + $0x78] sm:$0xff] %v1407
        %1472 = vst [vmem:[#allocation2 + $0x80] sm:$0xf] %v1408
        %1473 = vst [vmem:[#allocation2 + $0x84] sm:$0xff] %v1409
        %1474 = vst [vmem:[#allocation2 + $0x8c] sm:$0xf] %v1410
        %1475 = vst [vmem:[#allocation2 + $0x90] sm:$0xff] %v1411
        %1476 = vst [vmem:[#allocation2 + $0x98] sm:$0xf] %v1412
        %1477 = vst [vmem:[#allocation2 + $0x9c] sm:$0xff] %v1413
        %1478 = vst [vmem:[#allocation2 + $0xa4] sm:$0xf] %v1414
        %1479 = vst [vmem:[#allocation2 + $0xa8] sm:$0xff] %v1415
        %1480 = vst [vmem:[#allocation2 + $0xb0] sm:$0xf] %v1416
        %1481 = vst [vmem:[#allocation2 + $0xb4] sm:$0xff] %v1417
        %1482 = vst [vmem:[#allocation2 + $0xbc] sm:$0xf] %v1418
        %1483 = vst [vmem:[#allocation2 + $0xc0] sm:$0xff] %v1419
        %1484 = vst [vmem:[#allocation2 + $0xc8] sm:$0xf] %v1420
        %1485 = vst [vmem:[#allocation2 + $0xcc] sm:$0xff] %v1421
        %1486 = vst [vmem:[#allocation2 + $0xd4] sm:$0xf] %v1422
        %1487 = vst [vmem:[#allocation2 + $0xd8] sm:$0xff] %v1423
        %1488 = vst [vmem:[#allocation2 + $0xe0] sm:$0xf] %v1424
        %1489 = vst [vmem:[#allocation2 + $0xe4] sm:$0xff] %v1425
        %1490 = vst [vmem:[#allocation2 + $0xec] sm:$0xf] %v1426
        %1491 = vst [vmem:[#allocation2 + $0xf0] sm:$0xff] %v1427
        %1492 = vst [vmem:[#allocation2 + $0xf8] sm:$0xf] %v1428
        %1493 = vst [vmem:[#allocation2 + $0xfc] sm:$0xff] %v1429
        %1494 = vst [vmem:[#allocation2 + $0x104] sm:$0xf] %v1430
        %1495 = vst [vmem:[#allocation2 + $0x108] sm:$0xff] %v1431
        %1496 = vst [vmem:[#allocation2 + $0x110] sm:$0xf] %v1432
        %1497 = vst [vmem:[#allocation2 + $0x114] sm:$0xff] %v1433
        %1498 = vst [vmem:[#allocation2 + $0x11c] sm:$0xf] %v1434
        %1499 = vst [vmem:[#allocation2 + $0x120] sm:$0xff] %v1435
        %1500 = vst [vmem:[#allocation2 + $0x128] sm:$0xf] %v1436
        %1501 = vst [vmem:[#allocation2 + $0x12c] sm:$0xff] %v1437
        %1502 = vst [vmem:[#allocation2 + $0x134] sm:$0xf] %v1438
        %1503 = vst [vmem:[#allocation2 + $0x138] sm:$0xff] %v1439
        %1504 = vst [vmem:[#allocation2 + $0x140] sm:$0xf] %v1440
        %1505 = vst [vmem:[#allocation2 + $0x144] sm:$0xff] %v1441
        %1506 = vst [vmem:[#allocation2 + $0x14c] sm:$0xf] %v1442
        %1507 = vst [vmem:[#allocation2 + $0x150] sm:$0xff] %v1443
        %1508 = vst [vmem:[#allocation2 + $0x158] sm:$0xf] %v1444
        %1509 = vst [vmem:[#allocation2 + $0x15c] sm:$0xff] %v1445
        %1510 = vst [vmem:[#allocation2 + $0x164] sm:$0xf] %v1446
        %1511 = vst [vmem:[#allocation2 + $0x168] sm:$0xff] %v1447
        %1512 = vst [vmem:[#allocation2 + $0x170] sm:$0xf] %v1448
        %1513 = vst [vmem:[#allocation2 + $0x174] sm:$0xff] %v1449
        %1514 = vst [vmem:[#allocation2 + $0x17c] sm:$0xf] %v1450
        %v1515 = vld [vmem:[%s1] sm:$0xf]
        %v1516 = vld [vmem:[%s1 + $0x4] sm:$0xf]
        %v1517 = vld [vmem:[%s1 + $0x8] sm:$0xf]
        %v1518 = vld [vmem:[%s1 + $0xc] sm:$0xf]
        %v1519 = vld [vmem:[%s1 + $0x10] sm:$0xf]
        %v1520 = vld [vmem:[%s1 + $0x14] sm:$0xf]
        %v1521 = vld [vmem:[%s1 + $0x18] sm:$0xf]
        %v1522 = vld [vmem:[%s1 + $0x1c] sm:$0xf]
        %v1523 = vld [vmem:[%s1 + $0x20] sm:$0xf]
        %v1524 = vld [vmem:[%s1 + $0x24] sm:$0xf]
        %v1525 = vld [vmem:[%s1 + $0x28] sm:$0xf]
        %v1526 = vld [vmem:[%s1 + $0x2c] sm:$0xf]
        %v1527 = vld [vmem:[%s1 + $0x30] sm:$0xf]
        %v1528 = vld [vmem:[%s1 + $0x34] sm:$0xf]
        %v1529 = vld [vmem:[%s1 + $0x38] sm:$0xf]
        %v1530 = vld [vmem:[%s1 + $0x3c] sm:$0xf]
        %1531 = vst [vmem:[#allocation3] sm:$0xf] %v1515
        %1532 = vst [vmem:[#allocation3 + $0x8] sm:$0xf] %v1516
        %1533 = vst [vmem:[#allocation3 + $0x10] sm:$0xf] %v1517
        %1534 = vst [vmem:[#allocation3 + $0x18] sm:$0xf] %v1518
        %1535 = vst [vmem:[#allocation3 + $0x20] sm:$0xf] %v1519
        %1536 = vst [vmem:[#allocation3 + $0x28] sm:$0xf] %v1520
        %1537 = vst [vmem:[#allocation3 + $0x30] sm:$0xf] %v1521
        %1538 = vst [vmem:[#allocation3 + $0x38] sm:$0xf] %v1522
        %1539 = vst [vmem:[#allocation3 + $0x40] sm:$0xf] %v1523
        %1540 = vst [vmem:[#allocation3 + $0x48] sm:$0xf] %v1524
        %1541 = vst [vmem:[#allocation3 + $0x50] sm:$0xf] %v1525
        %1542 = vst [vmem:[#allocation3 + $0x58] sm:$0xf] %v1526
        %1543 = vst [vmem:[#allocation3 + $0x60] sm:$0xf] %v1527
        %1544 = vst [vmem:[#allocation3 + $0x68] sm:$0xf] %v1528
        %1545 = vst [vmem:[#allocation3 + $0x70] sm:$0xf] %v1529
        %1546 = vst [vmem:[#allocation3 + $0x78] sm:$0xf] %v1530
        loop: start=0, step=1, limit=2
        $region37: #{tpu_custom_call.1} parent=35 // loop_pre_header
          _
        $region38: #{tpu_custom_call.1} parent=35 // loop_header
          %s1548 = sphi 0, %s1552
          %p1549 = scmp.ge.s32.totalorder %s1548, 2
        $region39: #{tpu_custom_call.1} parent=35 // loop_header_branch
          %1551 = sbr.rel (%p1549) target = $region43
        $region40: #{tpu_custom_call.1} parent=35 // loop_body
          %s1553 = smul.u32 %s1548, 128
          %s1554 = sshra.s32 %s1553, 3
          %s1555 = sand.u32 %s1553, 7
          %s1556 = smul.u32 %s1554, 3
          %s1557 = smul.addr %s1556, 4
          %s1558 = scalar_lea.vmem [#allocation2], %s1557
          %v1559 = vld [vmem:[%s1558] sm:$0xf]
          %v1560 = vld [vmem:[%s1558 + $0xc] sm:$0xf]
          %v1561 = vld [vmem:[%s1558 + $0x18] sm:$0xf]
          %v1562 = vld [vmem:[%s1558 + $0x24] sm:$0xf]
          %v1563 = vld [vmem:[%s1558 + $0x30] sm:$0xf]
          %v1564 = vld [vmem:[%s1558 + $0x3c] sm:$0xf]
          %v1565 = vld [vmem:[%s1558 + $0x48] sm:$0xf]
          %v1566 = vld [vmem:[%s1558 + $0x54] sm:$0xf]
          %v1567 = vld [vmem:[%s1558 + $0x60] sm:$0xf]
          %v1568 = vld [vmem:[%s1558 + $0x6c] sm:$0xf]
          %v1569 = vld [vmem:[%s1558 + $0x78] sm:$0xf]
          %v1570 = vld [vmem:[%s1558 + $0x84] sm:$0xf]
          %v1571 = vld [vmem:[%s1558 + $0x90] sm:$0xf]
          %v1572 = vld [vmem:[%s1558 + $0x9c] sm:$0xf]
          %v1573 = vld [vmem:[%s1558 + $0xa8] sm:$0xf]
          %v1574 = vld [vmem:[%s1558 + $0xb4] sm:$0xf]
          %1575 = vst [vmem:[#allocation3 + $0x4] sm:$0xf] %v1559
          %1576 = vst [vmem:[#allocation3 + $0xc] sm:$0xf] %v1560
          %1577 = vst [vmem:[#allocation3 + $0x14] sm:$0xf] %v1561
          %1578 = vst [vmem:[#allocation3 + $0x1c] sm:$0xf] %v1562
          %1579 = vst [vmem:[#allocation3 + $0x24] sm:$0xf] %v1563
          %1580 = vst [vmem:[#allocation3 + $0x2c] sm:$0xf] %v1564
          %1581 = vst [vmem:[#allocation3 + $0x34] sm:$0xf] %v1565
          %1582 = vst [vmem:[#allocation3 + $0x3c] sm:$0xf] %v1566
          %1583 = vst [vmem:[#allocation3 + $0x44] sm:$0xf] %v1567
          %1584 = vst [vmem:[#allocation3 + $0x4c] sm:$0xf] %v1568
          %1585 = vst [vmem:[#allocation3 + $0x54] sm:$0xf] %v1569
          %1586 = vst [vmem:[#allocation3 + $0x5c] sm:$0xf] %v1570
          %1587 = vst [vmem:[#allocation3 + $0x64] sm:$0xf] %v1571
          %1588 = vst [vmem:[#allocation3 + $0x6c] sm:$0xf] %v1572
          %1589 = vst [vmem:[#allocation3 + $0x74] sm:$0xf] %v1573
          %1590 = vst [vmem:[#allocation3 + $0x7c] sm:$0xf] %v1574
          %v1591 = vld [vmem:[%s1558] sm:$0xff]
          %v1592 = vld [vmem:[%s1558 + $0xc] sm:$0xff]
          %v1593 = vld [vmem:[%s1558 + $0x18] sm:$0xff]
          %v1594 = vld [vmem:[%s1558 + $0x24] sm:$0xff]
          %v1595 = vld [vmem:[%s1558 + $0x30] sm:$0xff]
          %v1596 = vld [vmem:[%s1558 + $0x3c] sm:$0xff]
          %v1597 = vld [vmem:[%s1558 + $0x48] sm:$0xff]
          %v1598 = vld [vmem:[%s1558 + $0x54] sm:$0xff]
          %v1599 = vld [vmem:[%s1558 + $0x60] sm:$0xff]
          %v1600 = vld [vmem:[%s1558 + $0x6c] sm:$0xff]
          %v1601 = vld [vmem:[%s1558 + $0x78] sm:$0xff]
          %v1602 = vld [vmem:[%s1558 + $0x84] sm:$0xff]
          %v1603 = vld [vmem:[%s1558 + $0x90] sm:$0xff]
          %v1604 = vld [vmem:[%s1558 + $0x9c] sm:$0xff]
          %v1605 = vld [vmem:[%s1558 + $0xa8] sm:$0xff]
          %v1606 = vld [vmem:[%s1558 + $0xb4] sm:$0xff]
          %v1607 = vld [vmem:[#allocation3] sm:$0xff]
          %v1608 = vld [vmem:[#allocation3 + $0x8] sm:$0xff]
          %v1609 = vld [vmem:[#allocation3 + $0x10] sm:$0xff]
          %v1610 = vld [vmem:[#allocation3 + $0x18] sm:$0xff]
          %v1611 = vld [vmem:[#allocation3 + $0x20] sm:$0xff]
          %v1612 = vld [vmem:[#allocation3 + $0x28] sm:$0xff]
          %v1613 = vld [vmem:[#allocation3 + $0x30] sm:$0xff]
          %v1614 = vld [vmem:[#allocation3 + $0x38] sm:$0xff]
          %v1615 = vld [vmem:[#allocation3 + $0x40] sm:$0xff]
          %v1616 = vld [vmem:[#allocation3 + $0x48] sm:$0xff]
          %v1617 = vld [vmem:[#allocation3 + $0x50] sm:$0xff]
          %v1618 = vld [vmem:[#allocation3 + $0x58] sm:$0xff]
          %v1619 = vld [vmem:[#allocation3 + $0x60] sm:$0xff]
          %v1620 = vld [vmem:[#allocation3 + $0x68] sm:$0xff]
          %v1621 = vld [vmem:[#allocation3 + $0x70] sm:$0xff]
          %v1622 = vld [vmem:[#allocation3 + $0x78] sm:$0xff]
          %v1639 = vunpack.c.l.b16 %v1591
          %v1640 = vunpack.c.h.b16 %v1591
          %v1641 = vunpack.c.l.b16 %v1592
          %v1642 = vunpack.c.h.b16 %v1592
          %v1643 = vunpack.c.l.b16 %v1593
          %v1644 = vunpack.c.h.b16 %v1593
          %v1645 = vunpack.c.l.b16 %v1594
          %v1646 = vunpack.c.h.b16 %v1594
          %v1647 = vunpack.c.l.b16 %v1595
          %v1648 = vunpack.c.h.b16 %v1595
          %v1649 = vunpack.c.l.b16 %v1596
          %v1650 = vunpack.c.h.b16 %v1596
          %v1651 = vunpack.c.l.b16 %v1597
          %v1652 = vunpack.c.h.b16 %v1597
          %v1653 = vunpack.c.l.b16 %v1598
          %v1654 = vunpack.c.h.b16 %v1598
          %v1655 = vunpack.c.l.b16 %v1599
          %v1656 = vunpack.c.h.b16 %v1599
          %v1657 = vunpack.c.l.b16 %v1600
          %v1658 = vunpack.c.h.b16 %v1600
          %v1659 = vunpack.c.l.b16 %v1601
          %v1660 = vunpack.c.h.b16 %v1601
          %v1661 = vunpack.c.l.b16 %v1602
          %v1662 = vunpack.c.h.b16 %v1602
          %v1663 = vunpack.c.l.b16 %v1603
          %v1664 = vunpack.c.h.b16 %v1603
          %v1665 = vunpack.c.l.b16 %v1604
          %v1666 = vunpack.c.h.b16 %v1604
          %v1667 = vunpack.c.l.b16 %v1605
          %v1668 = vunpack.c.h.b16 %v1605
          %v1669 = vunpack.c.l.b16 %v1606
          %v1670 = vunpack.c.h.b16 %v1606
          %v1671 = vpack.c.b16 %v1641, %v1639
          %v1672 = vpack.c.b16 %v1642, %v1640
          %v1673 = vpack.c.b16 %v1645, %v1643
          %v1674 = vpack.c.b16 %v1646, %v1644
          %v1675 = vpack.c.b16 %v1649, %v1647
          %v1676 = vpack.c.b16 %v1650, %v1648
          %v1677 = vpack.c.b16 %v1653, %v1651
          %v1678 = vpack.c.b16 %v1654, %v1652
          %v1679 = vpack.c.b16 %v1657, %v1655
          %v1680 = vpack.c.b16 %v1658, %v1656
          %v1681 = vpack.c.b16 %v1661, %v1659
          %v1682 = vpack.c.b16 %v1662, %v1660
          %v1683 = vpack.c.b16 %v1665, %v1663
          %v1684 = vpack.c.b16 %v1666, %v1664
          %v1685 = vpack.c.b16 %v1669, %v1667
          %v1686 = vpack.c.b16 %v1670, %v1668
          %v1719 = vunpack.c.l.b16 %v1607
          %v1720 = vunpack.c.h.b16 %v1607
          %v1721 = vunpack.c.l.b16 %v1608
          %v1722 = vunpack.c.h.b16 %v1608
          %v1723 = vunpack.c.l.b16 %v1609
          %v1724 = vunpack.c.h.b16 %v1609
          %v1725 = vunpack.c.l.b16 %v1610
          %v1726 = vunpack.c.h.b16 %v1610
          %v1727 = vunpack.c.l.b16 %v1611
          %v1728 = vunpack.c.h.b16 %v1611
          %v1729 = vunpack.c.l.b16 %v1612
          %v1730 = vunpack.c.h.b16 %v1612
          %v1731 = vunpack.c.l.b16 %v1613
          %v1732 = vunpack.c.h.b16 %v1613
          %v1733 = vunpack.c.l.b16 %v1614
          %v1734 = vunpack.c.h.b16 %v1614
          %v1735 = vunpack.c.l.b16 %v1615
          %v1736 = vunpack.c.h.b16 %v1615
          %v1737 = vunpack.c.l.b16 %v1616
          %v1738 = vunpack.c.h.b16 %v1616
          %v1739 = vunpack.c.l.b16 %v1617
          %v1740 = vunpack.c.h.b16 %v1617
          %v1741 = vunpack.c.l.b16 %v1618
          %v1742 = vunpack.c.h.b16 %v1618
          %v1743 = vunpack.c.l.b16 %v1619
          %v1744 = vunpack.c.h.b16 %v1619
          %v1745 = vunpack.c.l.b16 %v1620
          %v1746 = vunpack.c.h.b16 %v1620
          %v1747 = vunpack.c.l.b16 %v1621
          %v1748 = vunpack.c.h.b16 %v1621
          %v1749 = vunpack.c.l.b16 %v1622
          %v1750 = vunpack.c.h.b16 %v1622
          %v1751 = vpack.c.b16 %v1721, %v1719
          %v1752 = vpack.c.b16 %v1722, %v1720
          %v1753 = vpack.c.b16 %v1725, %v1723
          %v1754 = vpack.c.b16 %v1726, %v1724
          %v1755 = vpack.c.b16 %v1729, %v1727
          %v1756 = vpack.c.b16 %v1730, %v1728
          %v1757 = vpack.c.b16 %v1733, %v1731
          %v1758 = vpack.c.b16 %v1734, %v1732
          %v1759 = vpack.c.b16 %v1737, %v1735
          %v1760 = vpack.c.b16 %v1738, %v1736
          %v1761 = vpack.c.b16 %v1741, %v1739
          %v1762 = vpack.c.b16 %v1742, %v1740
          %v1763 = vpack.c.b16 %v1745, %v1743
          %v1764 = vpack.c.b16 %v1746, %v1744
          %v1765 = vpack.c.b16 %v1749, %v1747
          %v1766 = vpack.c.b16 %v1750, %v1748
          %1783 = vmatpush.bf16.xpose.msra.mxu0 %v1765
          %1784 = vmatpush.bf16.xpose.msra.mxu0 %v1763
          %1785 = vmatpush.bf16.xpose.msra.mxu0 %v1761
          %1786 = vmatpush.bf16.xpose.msra.mxu0 %v1759
          %1787 = vmatpush.bf16.xpose.msra.mxu0 %v1757
          %1788 = vmatpush.bf16.xpose.msra.mxu0 %v1755
          %1789 = vmatpush.bf16.xpose.msra.mxu0 %v1753
          %1790 = vmatpush.bf16.xpose.msra.mxu0 %v1751
          %1791 = vmatmul.bf16.gmra.mxu0 %v1671
          %v1792 = vpop.f32.mrf.mxu0
          %v1793 = vadd.f32 0.0, %v1792
          %v1794 = vpop.f32.mrf.mxu0
          %v1795 = vadd.f32 0.0, %v1794
          %1796 = vmatmul.bf16.gmra.mxu0 %v1673
          %v1797 = vpop.f32.mrf.mxu0
          %v1798 = vadd.f32 0.0, %v1797
          %v1799 = vpop.f32.mrf.mxu0
          %v1800 = vadd.f32 0.0, %v1799
          %1801 = vmatmul.bf16.gmra.mxu0 %v1675
          %v1802 = vpop.f32.mrf.mxu0
          %v1803 = vadd.f32 0.0, %v1802
          %v1804 = vpop.f32.mrf.mxu0
          %v1805 = vadd.f32 0.0, %v1804
          %1806 = vmatmul.bf16.gmra.mxu0 %v1677
          %v1807 = vpop.f32.mrf.mxu0
          %v1808 = vadd.f32 0.0, %v1807
          %v1809 = vpop.f32.mrf.mxu0
          %v1810 = vadd.f32 0.0, %v1809
          %1811 = vmatmul.bf16.gmra.mxu0 %v1679
          %v1812 = vpop.f32.mrf.mxu0
          %v1813 = vadd.f32 0.0, %v1812
          %v1814 = vpop.f32.mrf.mxu0
          %v1815 = vadd.f32 0.0, %v1814
          %1816 = vmatmul.bf16.gmra.mxu0 %v1681
          %v1817 = vpop.f32.mrf.mxu0
          %v1818 = vadd.f32 0.0, %v1817
          %v1819 = vpop.f32.mrf.mxu0
          %v1820 = vadd.f32 0.0, %v1819
          %1821 = vmatmul.bf16.gmra.mxu0 %v1683
          %v1822 = vpop.f32.mrf.mxu0
          %v1823 = vadd.f32 0.0, %v1822
          %v1824 = vpop.f32.mrf.mxu0
          %v1825 = vadd.f32 0.0, %v1824
          %1826 = vmatmul.bf16.gmra.mxu0 %v1685
          %v1827 = vpop.f32.mrf.mxu0
          %v1828 = vadd.f32 0.0, %v1827
          %v1829 = vpop.f32.mrf.mxu0
          %v1830 = vadd.f32 0.0, %v1829
          %1831 = vdwg.mxu0
          %1832 = vmatpush.bf16.xpose.msra.mxu0 %v1766
          %1833 = vmatpush.bf16.xpose.msra.mxu0 %v1764
          %1834 = vmatpush.bf16.xpose.msra.mxu0 %v1762
          %1835 = vmatpush.bf16.xpose.msra.mxu0 %v1760
          %1836 = vmatpush.bf16.xpose.msra.mxu0 %v1758
          %1837 = vmatpush.bf16.xpose.msra.mxu0 %v1756
          %1838 = vmatpush.bf16.xpose.msra.mxu0 %v1754
          %1839 = vmatpush.bf16.xpose.msra.mxu0 %v1752
          %1840 = vmatmul.bf16.gmra.mxu0 %v1672
          %v1841 = vpop.f32.mrf.mxu0
          %v1842 = vadd.f32 %v1793, %v1841
          %v1843 = vpop.f32.mrf.mxu0
          %v1844 = vadd.f32 %v1795, %v1843
          %1845 = vmatmul.bf16.gmra.mxu0 %v1674
          %v1846 = vpop.f32.mrf.mxu0
          %v1847 = vadd.f32 %v1798, %v1846
          %v1848 = vpop.f32.mrf.mxu0
          %v1849 = vadd.f32 %v1800, %v1848
          %1850 = vmatmul.bf16.gmra.mxu0 %v1676
          %v1851 = vpop.f32.mrf.mxu0
          %v1852 = vadd.f32 %v1803, %v1851
          %v1853 = vpop.f32.mrf.mxu0
          %v1854 = vadd.f32 %v1805, %v1853
          %1855 = vmatmul.bf16.gmra.mxu0 %v1678
          %v1856 = vpop.f32.mrf.mxu0
          %v1857 = vadd.f32 %v1808, %v1856
          %v1858 = vpop.f32.mrf.mxu0
          %v1859 = vadd.f32 %v1810, %v1858
          %1860 = vmatmul.bf16.gmra.mxu0 %v1680
          %v1861 = vpop.f32.mrf.mxu0
          %v1862 = vadd.f32 %v1813, %v1861
          %v1863 = vpop.f32.mrf.mxu0
          %v1864 = vadd.f32 %v1815, %v1863
          %1865 = vmatmul.bf16.gmra.mxu0 %v1682
          %v1866 = vpop.f32.mrf.mxu0
          %v1867 = vadd.f32 %v1818, %v1866
          %v1868 = vpop.f32.mrf.mxu0
          %v1869 = vadd.f32 %v1820, %v1868
          %1870 = vmatmul.bf16.gmra.mxu0 %v1684
          %v1871 = vpop.f32.mrf.mxu0
          %v1872 = vadd.f32 %v1823, %v1871
          %v1873 = vpop.f32.mrf.mxu0
          %v1874 = vadd.f32 %v1825, %v1873
          %1875 = vmatmul.bf16.gmra.mxu0 %v1686
          %v1876 = vpop.f32.mrf.mxu0
          %v1877 = vadd.f32 %v1828, %v1876
          %v1878 = vpop.f32.mrf.mxu0
          %v1879 = vadd.f32 %v1830, %v1878
          %1880 = vdwg.mxu0
          %1881 = vmax.xlane.f32.xlu0 %v1842
          %v1882 = vpop.xlane.xlu0 %1881
          %1883 = vmax.xlane.f32.xlu0 %v1844
          %v1884 = vpop.xlane.xlu0 %1883
          %1885 = vmax.xlane.f32.xlu0 %v1847
          %v1886 = vpop.xlane.xlu0 %1885
          %1887 = vmax.xlane.f32.xlu0 %v1849
          %v1888 = vpop.xlane.xlu0 %1887
          %1889 = vmax.xlane.f32.xlu0 %v1852
          %v1890 = vpop.xlane.xlu0 %1889
          %1891 = vmax.xlane.f32.xlu0 %v1854
          %v1892 = vpop.xlane.xlu0 %1891
          %1893 = vmax.xlane.f32.xlu0 %v1857
          %v1894 = vpop.xlane.xlu0 %1893
          %1895 = vmax.xlane.f32.xlu0 %v1859
          %v1896 = vpop.xlane.xlu0 %1895
          %1897 = vmax.xlane.f32.xlu0 %v1862
          %v1898 = vpop.xlane.xlu0 %1897
          %1899 = vmax.xlane.f32.xlu0 %v1864
          %v1900 = vpop.xlane.xlu0 %1899
          %1901 = vmax.xlane.f32.xlu0 %v1867
          %v1902 = vpop.xlane.xlu0 %1901
          %1903 = vmax.xlane.f32.xlu0 %v1869
          %v1904 = vpop.xlane.xlu0 %1903
          %1905 = vmax.xlane.f32.xlu0 %v1872
          %v1906 = vpop.xlane.xlu0 %1905
          %1907 = vmax.xlane.f32.xlu0 %v1874
          %v1908 = vpop.xlane.xlu0 %1907
          %1909 = vmax.xlane.f32.xlu0 %v1877
          %v1910 = vpop.xlane.xlu0 %1909
          %1911 = vmax.xlane.f32.xlu0 %v1879
          %v1912 = vpop.xlane.xlu0 %1911
          %v1913 = vsub.f32 %v1842, %v1882
          %v1914 = vsub.f32 %v1844, %v1884
          %v1915 = vsub.f32 %v1847, %v1886
          %v1916 = vsub.f32 %v1849, %v1888
          %v1917 = vsub.f32 %v1852, %v1890
          %v1918 = vsub.f32 %v1854, %v1892
          %v1919 = vsub.f32 %v1857, %v1894
          %v1920 = vsub.f32 %v1859, %v1896
          %v1921 = vsub.f32 %v1862, %v1898
          %v1922 = vsub.f32 %v1864, %v1900
          %v1923 = vsub.f32 %v1867, %v1902
          %v1924 = vsub.f32 %v1869, %v1904
          %v1925 = vsub.f32 %v1872, %v1906
          %v1926 = vsub.f32 %v1874, %v1908
          %v1927 = vsub.f32 %v1877, %v1910
          %v1928 = vsub.f32 %v1879, %v1912
          %v1929 = vmul.f32 %v1913, 1.442695
          %v1930 = vpow.pop %v1929
          %v1931 = vmul.f32 %v1914, 1.442695
          %v1932 = vpow.pop %v1931
          %v1933 = vmul.f32 %v1915, 1.442695
          %v1934 = vpow.pop %v1933
          %v1935 = vmul.f32 %v1916, 1.442695
          %v1936 = vpow.pop %v1935
          %v1937 = vmul.f32 %v1917, 1.442695
          %v1938 = vpow.pop %v1937
          %v1939 = vmul.f32 %v1918, 1.442695
          %v1940 = vpow.pop %v1939
          %v1941 = vmul.f32 %v1919, 1.442695
          %v1942 = vpow.pop %v1941
          %v1943 = vmul.f32 %v1920, 1.442695
          %v1944 = vpow.pop %v1943
          %v1945 = vmul.f32 %v1921, 1.442695
          %v1946 = vpow.pop %v1945
          %v1947 = vmul.f32 %v1922, 1.442695
          %v1948 = vpow.pop %v1947
          %v1949 = vmul.f32 %v1923, 1.442695
          %v1950 = vpow.pop %v1949
          %v1951 = vmul.f32 %v1924, 1.442695
          %v1952 = vpow.pop %v1951
          %v1953 = vmul.f32 %v1925, 1.442695
          %v1954 = vpow.pop %v1953
          %v1955 = vmul.f32 %v1926, 1.442695
          %v1956 = vpow.pop %v1955
          %v1957 = vmul.f32 %v1927, 1.442695
          %v1958 = vpow.pop %v1957
          %v1959 = vmul.f32 %v1928, 1.442695
          %v1960 = vpow.pop %v1959
          %1961 = vadd.xlane.f32.xlu0 %v1930
          %v1962 = vpop.xlane.xlu0 %1961
          %1963 = vadd.xlane.f32.xlu0 %v1932
          %v1964 = vpop.xlane.xlu0 %1963
          %1965 = vadd.xlane.f32.xlu0 %v1934
          %v1966 = vpop.xlane.xlu0 %1965
          %1967 = vadd.xlane.f32.xlu0 %v1936
          %v1968 = vpop.xlane.xlu0 %1967
          %1969 = vadd.xlane.f32.xlu0 %v1938
          %v1970 = vpop.xlane.xlu0 %1969
          %1971 = vadd.xlane.f32.xlu0 %v1940
          %v1972 = vpop.xlane.xlu0 %1971
          %1973 = vadd.xlane.f32.xlu0 %v1942
          %v1974 = vpop.xlane.xlu0 %1973
          %1975 = vadd.xlane.f32.xlu0 %v1944
          %v1976 = vpop.xlane.xlu0 %1975
          %1977 = vadd.xlane.f32.xlu0 %v1946
          %v1978 = vpop.xlane.xlu0 %1977
          %1979 = vadd.xlane.f32.xlu0 %v1948
          %v1980 = vpop.xlane.xlu0 %1979
          %1981 = vadd.xlane.f32.xlu0 %v1950
          %v1982 = vpop.xlane.xlu0 %1981
          %1983 = vadd.xlane.f32.xlu0 %v1952
          %v1984 = vpop.xlane.xlu0 %1983
          %1985 = vadd.xlane.f32.xlu0 %v1954
          %v1986 = vpop.xlane.xlu0 %1985
          %1987 = vadd.xlane.f32.xlu0 %v1956
          %v1988 = vpop.xlane.xlu0 %1987
          %1989 = vadd.xlane.f32.xlu0 %v1958
          %v1990 = vpop.xlane.xlu0 %1989
          %1991 = vadd.xlane.f32.xlu0 %v1960
          %v1992 = vpop.xlane.xlu0 %1991
          %v1993 = vrcp.pop %v1962
          %v1994 = vrcp.pop %v1964
          %v1995 = vrcp.pop %v1966
          %v1996 = vrcp.pop %v1968
          %v1997 = vrcp.pop %v1970
          %v1998 = vrcp.pop %v1972
          %v1999 = vrcp.pop %v1974
          %v2000 = vrcp.pop %v1976
          %v2001 = vrcp.pop %v1978
          %v2002 = vrcp.pop %v1980
          %v2003 = vrcp.pop %v1982
          %v2004 = vrcp.pop %v1984
          %v2005 = vrcp.pop %v1986
          %v2006 = vrcp.pop %v1988
          %v2007 = vrcp.pop %v1990
          %v2008 = vrcp.pop %v1992
          %v2009 = vmul.f32 %v1930, %v1993
          %v2010 = vmul.f32 %v1932, %v1994
          %v2011 = vmul.f32 %v1934, %v1995
          %v2012 = vmul.f32 %v1936, %v1996
          %v2013 = vmul.f32 %v1938, %v1997
          %v2014 = vmul.f32 %v1940, %v1998
          %v2015 = vmul.f32 %v1942, %v1999
          %v2016 = vmul.f32 %v1944, %v2000
          %v2017 = vmul.f32 %v1946, %v2001
          %v2018 = vmul.f32 %v1948, %v2002
          %v2019 = vmul.f32 %v1950, %v2003
          %v2020 = vmul.f32 %v1952, %v2004
          %v2021 = vmul.f32 %v1954, %v2005
          %v2022 = vmul.f32 %v1956, %v2006
          %v2023 = vmul.f32 %v1958, %v2007
          %v2024 = vmul.f32 %v1960, %v2008
          %v2025 = vadd.f32 %v2009, 1e-08
          %v2026 = vadd.f32 %v2010, 1e-08
          %v2027 = vadd.f32 %v2011, 1e-08
          %v2028 = vadd.f32 %v2012, 1e-08
          %v2029 = vadd.f32 %v2013, 1e-08
          %v2030 = vadd.f32 %v2014, 1e-08
          %v2031 = vadd.f32 %v2015, 1e-08
          %v2032 = vadd.f32 %v2016, 1e-08
          %v2033 = vadd.f32 %v2017, 1e-08
          %v2034 = vadd.f32 %v2018, 1e-08
          %v2035 = vadd.f32 %v2019, 1e-08
          %v2036 = vadd.f32 %v2020, 1e-08
          %v2037 = vadd.f32 %v2021, 1e-08
          %v2038 = vadd.f32 %v2022, 1e-08
          %v2039 = vadd.f32 %v2023, 1e-08
          %v2040 = vadd.f32 %v2024, 1e-08
          %v2041 = vadd.f32 %v2025, %v2026
          %v2042 = vadd.f32 %v2041, %v2027
          %v2043 = vadd.f32 %v2042, %v2028
          %v2044 = vadd.f32 %v2043, %v2029
          %v2045 = vadd.f32 %v2044, %v2030
          %v2046 = vadd.f32 %v2045, %v2031
          %v2047 = vadd.f32 %v2046, %v2032
          %v2048 = vadd.f32 %v2047, %v2033
          %v2049 = vadd.f32 %v2048, %v2034
          %v2050 = vadd.f32 %v2049, %v2035
          %v2051 = vadd.f32 %v2050, %v2036
          %v2052 = vadd.f32 %v2051, %v2037
          %v2053 = vadd.f32 %v2052, %v2038
          %v2054 = vadd.f32 %v2053, %v2039
          %v2055 = vadd.f32 %v2054, %v2040
          %v2056 = vrot.slane %v2055, 4
          %v2057 = vadd.f32 %v2055, %v2056
          %v2058 = vrot.slane %v2057, 2
          %v2059 = vadd.f32 %v2057, %v2058
          %v2060 = vrot.slane %v2059, 1
          %v2061 = vadd.f32 %v2059, %v2060
          %v2062 = vrcp.pop %v2061
          %v2063 = vmul.f32 %v2061, %v2062
          %v2064 = vsub.f32 1.0, %v2063
          %v2065 = vmul.f32 %v2062, %v2064
          %v2066 = vadd.f32 %v2062, %v2065
          %vm2067 = vweird.f32 %v2061
          %vm2068 = vweird.f32 %v2062
          %vm2069 = vmor %vm2067, %vm2068
          %v2070 = vsel %vm2069, %v2062, %v2066
          %v2071 = vand.u32 2147483647, %v2061
          %vm2072 = vcmp.eq.f32.partialorder %v2071, 8.507059e+37
          %v2073 = vand.u32 %v2061, 2147483648
          %v2074 = vor.u32 1.1754944e-38, %v2073
          %v2075 = vsel %vm2072, %v2074, %v2070
          %v2076 = vmul.f32 %v2025, %v2075
          %v2077 = vmul.f32 %v2026, %v2075
          %v2078 = vmul.f32 %v2027, %v2075
          %v2079 = vmul.f32 %v2028, %v2075
          %v2080 = vmul.f32 %v2029, %v2075
          %v2081 = vmul.f32 %v2030, %v2075
          %v2082 = vmul.f32 %v2031, %v2075
          %v2083 = vmul.f32 %v2032, %v2075
          %v2084 = vmul.f32 %v2033, %v2075
          %v2085 = vmul.f32 %v2034, %v2075
          %v2086 = vmul.f32 %v2035, %v2075
          %v2087 = vmul.f32 %v2036, %v2075
          %v2088 = vmul.f32 %v2037, %v2075
          %v2089 = vmul.f32 %v2038, %v2075
          %v2090 = vmul.f32 %v2039, %v2075
          %v2091 = vmul.f32 %v2040, %v2075
          %v2092 = vpack.c.bf16 %v2077, %v2076
          %v2093 = vpack.c.bf16 %v2079, %v2078
          %v2094 = vpack.c.bf16 %v2081, %v2080
          %v2095 = vpack.c.bf16 %v2083, %v2082
          %v2096 = vpack.c.bf16 %v2085, %v2084
          %v2097 = vpack.c.bf16 %v2087, %v2086
          %v2098 = vpack.c.bf16 %v2089, %v2088
          %v2099 = vpack.c.bf16 %v2091, %v2090
          %v2100 = vld [vmem:[%s1558 + $0x8] sm:$0xf]
          %v2101 = vld [vmem:[%s1558 + $0x14] sm:$0xf]
          %v2102 = vld [vmem:[%s1558 + $0x20] sm:$0xf]
          %v2103 = vld [vmem:[%s1558 + $0x2c] sm:$0xf]
          %v2104 = vld [vmem:[%s1558 + $0x38] sm:$0xf]
          %v2105 = vld [vmem:[%s1558 + $0x44] sm:$0xf]
          %v2106 = vld [vmem:[%s1558 + $0x50] sm:$0xf]
          %v2107 = vld [vmem:[%s1558 + $0x5c] sm:$0xf]
          %v2108 = vld [vmem:[%s1558 + $0x68] sm:$0xf]
          %v2109 = vld [vmem:[%s1558 + $0x74] sm:$0xf]
          %v2110 = vld [vmem:[%s1558 + $0x80] sm:$0xf]
          %v2111 = vld [vmem:[%s1558 + $0x8c] sm:$0xf]
          %v2112 = vld [vmem:[%s1558 + $0x98] sm:$0xf]
          %v2113 = vld [vmem:[%s1558 + $0xa4] sm:$0xf]
          %v2114 = vld [vmem:[%s1558 + $0xb0] sm:$0xf]
          %v2115 = vld [vmem:[%s1558 + $0xbc] sm:$0xf]
          %v2132 = vunpack.c.l.b16 %v2100
          %v2133 = vunpack.c.l.b16 %v2101
          %v2134 = vunpack.c.l.b16 %v2102
          %v2135 = vunpack.c.l.b16 %v2103
          %v2136 = vunpack.c.l.b16 %v2104
          %v2137 = vunpack.c.l.b16 %v2105
          %v2138 = vunpack.c.l.b16 %v2106
          %v2139 = vunpack.c.l.b16 %v2107
          %v2140 = vunpack.c.l.b16 %v2108
          %v2141 = vunpack.c.l.b16 %v2109
          %v2142 = vunpack.c.l.b16 %v2110
          %v2143 = vunpack.c.l.b16 %v2111
          %v2144 = vunpack.c.l.b16 %v2112
          %v2145 = vunpack.c.l.b16 %v2113
          %v2146 = vunpack.c.l.b16 %v2114
          %v2147 = vunpack.c.l.b16 %v2115
          %v2148 = vpack.c.b16 %v2133, %v2132
          %v2149 = vpack.c.b16 %v2135, %v2134
          %v2150 = vpack.c.b16 %v2137, %v2136
          %v2151 = vpack.c.b16 %v2139, %v2138
          %v2152 = vpack.c.b16 %v2141, %v2140
          %v2153 = vpack.c.b16 %v2143, %v2142
          %v2154 = vpack.c.b16 %v2145, %v2144
          %v2155 = vpack.c.b16 %v2147, %v2146
          %2164 = vmatpush.bf16.msra.mxu0 %v2155
          %2165 = vmatpush.bf16.msra.mxu0 %v2154
          %2166 = vmatpush.bf16.msra.mxu0 %v2153
          %2167 = vmatpush.bf16.msra.mxu0 %v2152
          %2168 = vmatpush.bf16.msra.mxu0 %v2151
          %2169 = vmatpush.bf16.msra.mxu0 %v2150
          %2170 = vmatpush.bf16.msra.mxu0 %v2149
          %2171 = vmatpush.bf16.msra.mxu0 %v2148
          %2172 = vmatmul.bf16.gmra.mxu0 %v2092
          %v2173 = vpop.f32.mrf.mxu0
          %v2174 = vadd.f32 0.0, %v2173
          %v2175 = vpop.f32.mrf.mxu0
          %v2176 = vadd.f32 0.0, %v2175
          %2177 = vmatmul.bf16.gmra.mxu0 %v2093
          %v2178 = vpop.f32.mrf.mxu0
          %v2179 = vadd.f32 0.0, %v2178
          %v2180 = vpop.f32.mrf.mxu0
          %v2181 = vadd.f32 0.0, %v2180
          %2182 = vmatmul.bf16.gmra.mxu0 %v2094
          %v2183 = vpop.f32.mrf.mxu0
          %v2184 = vadd.f32 0.0, %v2183
          %v2185 = vpop.f32.mrf.mxu0
          %v2186 = vadd.f32 0.0, %v2185
          %2187 = vmatmul.bf16.gmra.mxu0 %v2095
          %v2188 = vpop.f32.mrf.mxu0
          %v2189 = vadd.f32 0.0, %v2188
          %v2190 = vpop.f32.mrf.mxu0
          %v2191 = vadd.f32 0.0, %v2190
          %2192 = vmatmul.bf16.gmra.mxu0 %v2096
          %v2193 = vpop.f32.mrf.mxu0
          %v2194 = vadd.f32 0.0, %v2193
          %v2195 = vpop.f32.mrf.mxu0
          %v2196 = vadd.f32 0.0, %v2195
          %2197 = vmatmul.bf16.gmra.mxu0 %v2097
          %v2198 = vpop.f32.mrf.mxu0
          %v2199 = vadd.f32 0.0, %v2198
          %v2200 = vpop.f32.mrf.mxu0
          %v2201 = vadd.f32 0.0, %v2200
          %2202 = vmatmul.bf16.gmra.mxu0 %v2098
          %v2203 = vpop.f32.mrf.mxu0
          %v2204 = vadd.f32 0.0, %v2203
          %v2205 = vpop.f32.mrf.mxu0
          %v2206 = vadd.f32 0.0, %v2205
          %2207 = vmatmul.bf16.gmra.mxu0 %v2099
          %v2208 = vpop.f32.mrf.mxu0
          %v2209 = vadd.f32 0.0, %v2208
          %v2210 = vpop.f32.mrf.mxu0
          %v2211 = vadd.f32 0.0, %v2210
          %2212 = vdwg.mxu0
          %s2213 = scalar_lea.vmem %s191, %s1553 [#allocation4]
          %2214 = vst [vmem:[%s2213] sm:$0xff] %v2174
          %2215 = vst [vmem:[%s2213 + $0x8] sm:$0xff] %v2176
          %2216 = vst [vmem:[%s2213 + $0x10] sm:$0xff] %v2179
          %2217 = vst [vmem:[%s2213 + $0x18] sm:$0xff] %v2181
          %2218 = vst [vmem:[%s2213 + $0x20] sm:$0xff] %v2184
          %2219 = vst [vmem:[%s2213 + $0x28] sm:$0xff] %v2186
          %2220 = vst [vmem:[%s2213 + $0x30] sm:$0xff] %v2189
          %2221 = vst [vmem:[%s2213 + $0x38] sm:$0xff] %v2191
          %2222 = vst [vmem:[%s2213 + $0x40] sm:$0xff] %v2194
          %2223 = vst [vmem:[%s2213 + $0x48] sm:$0xff] %v2196
          %2224 = vst [vmem:[%s2213 + $0x50] sm:$0xff] %v2199
          %2225 = vst [vmem:[%s2213 + $0x58] sm:$0xff] %v2201
          %2226 = vst [vmem:[%s2213 + $0x60] sm:$0xff] %v2204
          %2227 = vst [vmem:[%s2213 + $0x68] sm:$0xff] %v2206
          %2228 = vst [vmem:[%s2213 + $0x70] sm:$0xff] %v2209
          %2229 = vst [vmem:[%s2213 + $0x78] sm:$0xff] %v2211
        $region41: #{tpu_custom_call.1} parent=35 // loop_footer
          %s1552 = sadd.s32 1, %s1548
        $region42: #{tpu_custom_call.1} parent=35 // loop_footer_branch
          %1547 = sbr.rel target = $region38
        $region43: #{tpu_custom_call.1} parent=35 // loop_exit
          _
        %s2230 = sand.u32 %s115, 1
        %s2231 = scalar_lea.sflag [#allocation5], %s2230
        %s2232 = sand.u32 %s115, 1
        %s2233 = smul.addr %s2232, 256
        %s2234 = scalar_lea.vmem [#allocation4], %s2233
        // Predicated region
        $region44: #{tpu_custom_call.1} parent=35 // pred_check
          %p2235 = pneg %p125
        $region45: #{tpu_custom_call.1} parent=35 // pred_check_branch
          %2237 = sbr.rel (%p2235) target = $region47
        $region46: #{tpu_custom_call.1} parent=35 // pred_region
          %s2238 = smul.u32 32, %s18
          %2240 = vsyncadd %s2231, 0
          %s2241 = smul.addr %s2238, 8
          %s2242 = scalar_lea.hbm %s4, %s2241
          %s2243 = sshll.u32 %s2234, 4
          %s2244 = int_to_ptr.vmem [resolvable:$true] %s2243
          %s2245 = sshll.u32 %s2242, 4
          %s2246 = int_to_ptr.hbm [resolvable:$true] %s2245
          %2251 = dma.vmem_to_hbm [thread:$0]  %s2244, 4096, %s2246, %s2231, 128, 128, 8
        $region47: #{tpu_custom_call.1} parent=35 // pred_fallthru
          _
      $region36: #{tpu_custom_call.1} parent=5 // pred_fallthru
        _
      %p2252 = scmp.le.s32.totalorder 2, %s13
      // Predicated region
      $region48: #{tpu_custom_call.1} parent=5 // pred_check
        %p2253 = pneg %p2252
      $region49: #{tpu_custom_call.1} parent=5 // pred_check_branch
        %2255 = sbr.rel (%p2253) target = $region51
      $region50: #{tpu_custom_call.1} parent=5 // pred_region
        %s2256 = ssub.s32 %s13, 2
        // Predicated region
        $region52: #{tpu_custom_call.1} parent=50 // pred_check
          %p2257 = pneg %p131
        $region53: #{tpu_custom_call.1} parent=50 // pred_check_branch
          %2259 = sbr.rel (%p2257) target = $region55
        $region54: #{tpu_custom_call.1} parent=50 // pred_region
          %s2260 = sand.u32 %s116, 1
          %s2261 = scalar_lea.sflag [#allocation5], %s2260
          %s2262 = sand.u32 %s116, 1
          %s2263 = smul.addr %s2262, 256
          %s2264 = scalar_lea.vmem [#allocation4], %s2263
          %2266 = dma.done %s2261, 4096
        $region55: #{tpu_custom_call.1} parent=50 // pred_fallthru
          _
      $region51: #{tpu_custom_call.1} parent=5 // pred_fallthru
        _
    $region6: #{tpu_custom_call.1} parent=1 // loop_footer
      %s17 = sadd.s32 1, %s13
    $region7: #{tpu_custom_call.1} parent=1 // loop_footer_branch
      %12 = sbr.rel target = $region3
    $region8: #{tpu_custom_call.1} parent=1 // loop_exit
      _
    %2267 = vsyncpa [#allocation5], 1
    %s2268 = scalar_lea.sflag [#allocation5], 1
    %2269 = vsyncpa %s2268, 1

</llo_original>
